<compile_context>
chip_gen: v7x
topology: tpu7x:2x2x1
jax: 0.10.0
libtpu: 0.0.40
codegen_flags: <defaults>
</compile_context>

<pallas_src>
import jax
import jax.numpy as jnp
from jax.experimental import pallas as pl
from jax.experimental.pallas import tpu as pltpu

MAX_POSE_NOISE = 0.1
LN_EPS = 1e-5          # PyTorch nn.LayerNorm default
LEAKY_SLOPE = 0.2
LANE = 128             # lane width: pad feature dims to multiples of this
TILE_CAP = 256         # max batch rows per grid step (matches v6e/v7x 256-row MXU)


def _round_up(a, b):
    return (a + b - 1) // b * b


def _leaky_relu(x, slope=LEAKY_SLOPE):
    return jnp.where(x > 0, x, slope * x)


def _layernorm(x, gamma, beta, eps=LN_EPS):
    mu = jnp.mean(x, axis=-1, keepdims=True)
    xc = x - mu
    var = jnp.mean(xc * xc, axis=-1, keepdims=True)   # biased var, like PyTorch
    return xc * jax.lax.rsqrt(var + eps) * gamma + beta


def pose_mlp_kernel(x_ref,
                    w1_ref, b1_ref, g1_ref, be1_ref,
                    w2_ref, b2_ref, g2_ref, be2_ref,
                    w3_ref, b3_ref,
                    o_ref):
    # Layer 1: Linear(K_pad -> H) + LeakyReLU(0.2) + LayerNorm(H)
    x = x_ref[...].astype(jnp.bfloat16)
    h = jnp.dot(x, w1_ref[...], preferred_element_type=jnp.float32) + b1_ref[...]
    h = _leaky_relu(h)
    h = _layernorm(h, g1_ref[...], be1_ref[...])

    # Layer 2: Linear(H -> H) + LeakyReLU(0.2) + LayerNorm(H)
    h = jnp.dot(h.astype(jnp.bfloat16), w2_ref[...],
                preferred_element_type=jnp.float32) + b2_ref[...]
    h = _leaky_relu(h)
    h = _layernorm(h, g2_ref[...], be2_ref[...])

    # Layer 3: Linear(H -> N_pad) + Tanh, scaled by max_pose_noise
    y = jnp.dot(h.astype(jnp.bfloat16), w3_ref[...],
                preferred_element_type=jnp.float32) + b3_ref[...]
    o_ref[...] = (jnp.tanh(y) * MAX_POSE_NOISE).astype(o_ref.dtype)


def enhanced_pose_model(x, params, *, out_dim=36, tile_cap=TILE_CAP):
    """x: [B, input_dim] float32; params: dict of padded, pre-transposed (bf16) weights."""
    B, d_in = x.shape
    Kp, H = params["w1"].shape          # padded input-feature dim, hidden dim
    Np = params["w3"].shape[1]          # padded output dim (lane-dense)

    tm = min(tile_cap, _round_up(B, 8))        # row tile, multiple of 8 sublanes
    Bp = _round_up(B, tm)                      # padded batch so the grid divides evenly

    xp = x
    if Bp != B or Kp != d_in:
        xp = jnp.pad(x, ((0, Bp - B), (0, Kp - d_in)))

    full = lambda shape: pl.BlockSpec(shape, lambda i: (0, 0))   # resident across grid

    cost = pl.CostEstimate(
        flops=2 * Bp * (Kp * H + H * H + H * Np),
        transcendentals=Bp * (Np + 2),          # tanh row + 2 rsqrt per row (approx)
        bytes_accessed=(xp.size * xp.dtype.itemsize
                        + Bp * Np * 4
                        + sum(int(v.size) * v.dtype.itemsize for v in params.values())),
    )

    out = pl.pallas_call(
        pose_mlp_kernel,
        out_shape=jax.ShapeDtypeStruct((Bp, Np), jnp.float32),
        grid_spec=pltpu.PrefetchScalarGridSpec(
            num_scalar_prefetch=0,
            grid=(Bp // tm,),
            in_specs=[
                pl.BlockSpec((tm, Kp), lambda i: (i, 0)),                    # x tile
                full((Kp, H)), full((1, H)), full((1, H)), full((1, H)),     # layer 1
                full((H, H)),  full((1, H)), full((1, H)), full((1, H)),     # layer 2
                full((H, Np)), full((1, Np)),                                # layer 3
            ],
            out_specs=pl.BlockSpec((tm, Np), lambda i: (i, 0)),
        ),
        compiler_params=pltpu.CompilerParams(
            dimension_semantics=("parallel",)),
        cost_estimate=cost,
    )(xp,
      params["w1"], params["b1"], params["g1"], params["be1"],
      params["w2"], params["b2"], params["g2"], params["be2"],
      params["w3"], params["b3"])

    return out[:B, :out_dim]


def init_params(key, input_dim=37, hidden_dim=512, output_dim=36):
    """Kaiming-normal (fan_out, leaky_relu a=0.2) weights, zero biases, LN gamma=1/beta=0,
    matching the PyTorch _initialize_weights.  Weights are pre-transposed to (in, out),
    zero-padded to lane-dense shapes, and stored in bf16."""
    gain = (2.0 / (1.0 + LEAKY_SLOPE ** 2)) ** 0.5
    k1, k2, k3 = jax.random.split(key, 3)

    def kaiming(k, fan_in, fan_out):
        std = gain / (fan_out ** 0.5)  # mode='fan_out'
        return jax.random.normal(k, (fan_in, fan_out), jnp.float32) * std

    kp = _round_up(input_dim, LANE)    # 37 -> 128
    np_ = _round_up(output_dim, LANE)  # 36 -> 128

    w1 = jnp.pad(kaiming(k1, input_dim, hidden_dim), ((0, kp - input_dim), (0, 0)))
    w2 = kaiming(k2, hidden_dim, hidden_dim)
    w3 = jnp.pad(kaiming(k3, hidden_dim, output_dim), ((0, 0), (0, np_ - output_dim)))

    return {
        "w1": w1.astype(jnp.bfloat16),
        "b1": jnp.zeros((1, hidden_dim), jnp.float32),
        "g1": jnp.ones((1, hidden_dim), jnp.float32),
        "be1": jnp.zeros((1, hidden_dim), jnp.float32),
        "w2": w2.astype(jnp.bfloat16),
        "b2": jnp.zeros((1, hidden_dim), jnp.float32),
        "g2": jnp.ones((1, hidden_dim), jnp.float32),
        "be2": jnp.zeros((1, hidden_dim), jnp.float32),
        "w3": w3.astype(jnp.bfloat16),
        "b3": jnp.zeros((1, np_), jnp.float32),
    }


def reference_forward(x, p, out_dim=36):
    """Pure-JAX reference mimicking the kernel numerics (bf16 MXU operands, f32 accumulate,
    f32 epilogue) on the same padded parameters."""
    Kp = p["w1"].shape[0]
    xp = jnp.pad(x, ((0, 0), (0, Kp - x.shape[1])))
    h = jnp.dot(xp.astype(jnp.bfloat16), p["w1"],
                preferred_element_type=jnp.float32) + p["b1"]
    h = _leaky_relu(h)
    h = _layernorm(h, p["g1"], p["be1"])
    h = jnp.dot(h.astype(jnp.bfloat16), p["w2"],
                preferred_element_type=jnp.float32) + p["b2"]
    h = _leaky_relu(h)
    h = _layernorm(h, p["g2"], p["be2"])
    y = jnp.dot(h.astype(jnp.bfloat16), p["w3"],
                preferred_element_type=jnp.float32) + p["b3"]
    return (jnp.tanh(y) * MAX_POSE_NOISE)[:, :out_dim]


if __name__ == "__main__":
    key = jax.random.PRNGKey(0)
    kx, kp = jax.random.split(key)

    B, INPUT_DIM, HIDDEN_DIM, OUTPUT_DIM = 16, 37, 512, 36
    x = jax.random.normal(kx, (B, INPUT_DIM), jnp.float32)
    params = init_params(kp, INPUT_DIM, HIDDEN_DIM, OUTPUT_DIM)

    out = enhanced_pose_model(x, params, out_dim=OUTPUT_DIM)
    out = jax.block_until_ready(out)

    ref = reference_forward(x, params, out_dim=OUTPUT_DIM)
    assert out.shape == (B, OUTPUT_DIM)
    # Kernel and reference use identical bf16-operand / f32-accumulate numerics.
    assert jnp.allclose(out, ref, atol=1e-4, rtol=1e-4), "mismatch vs JAX reference"

    print("KERNEL_OK")
</pallas_src>

<mosaic_0001>
module attributes {stable_mosaic.version = 11 : i64} {
  func.func @pose_mlp_kernel(%arg0: i32, %arg1: memref<16x128xf32, #tpu.memory_space<vmem>>, %arg2: memref<128x512xbf16, #tpu.memory_space<vmem>>, %arg3: memref<1x512xf32, #tpu.memory_space<vmem>>, %arg4: memref<1x512xf32, #tpu.memory_space<vmem>>, %arg5: memref<1x512xf32, #tpu.memory_space<vmem>>, %arg6: memref<512x512xbf16, #tpu.memory_space<vmem>>, %arg7: memref<1x512xf32, #tpu.memory_space<vmem>>, %arg8: memref<1x512xf32, #tpu.memory_space<vmem>>, %arg9: memref<1x512xf32, #tpu.memory_space<vmem>>, %arg10: memref<512x128xbf16, #tpu.memory_space<vmem>>, %arg11: memref<1x128xf32, #tpu.memory_space<vmem>>, %arg12: memref<16x128xf32, #tpu.memory_space<vmem>>) attributes {dimension_semantics = [#tpu.dimension_semantics<parallel>], iteration_bounds = array<i64: 1>, scalar_prefetch = 0 : i64, scratch_operands = 0 : i64, tpu.core_type = #tpu.core_type<tc>, window_params = [{transform_indices = @transform_0, window_bounds = array<i64: 16, 128>}, {pipeline_mode = #tpu.pipeline_mode<synchronous>, transform_indices = @transform_1, window_bounds = array<i64: 128, 512>}, {pipeline_mode = #tpu.pipeline_mode<synchronous>, transform_indices = @transform_2, window_bounds = array<i64: 1, 512>}, {pipeline_mode = #tpu.pipeline_mode<synchronous>, transform_indices = @transform_3, window_bounds = array<i64: 1, 512>}, {pipeline_mode = #tpu.pipeline_mode<synchronous>, transform_indices = @transform_4, window_bounds = array<i64: 1, 512>}, {pipeline_mode = #tpu.pipeline_mode<synchronous>, transform_indices = @transform_5, window_bounds = array<i64: 512, 512>}, {pipeline_mode = #tpu.pipeline_mode<synchronous>, transform_indices = @transform_6, window_bounds = array<i64: 1, 512>}, {pipeline_mode = #tpu.pipeline_mode<synchronous>, transform_indices = @transform_7, window_bounds = array<i64: 1, 512>}, {pipeline_mode = #tpu.pipeline_mode<synchronous>, transform_indices = @transform_8, window_bounds = array<i64: 1, 512>}, {pipeline_mode = #tpu.pipeline_mode<synchronous>, transform_indices = @transform_9, window_bounds = array<i64: 512, 128>}, {pipeline_mode = #tpu.pipeline_mode<synchronous>, transform_indices = @transform_10, window_bounds = array<i64: 1, 128>}, {transform_indices = @transform_11, window_bounds = array<i64: 16, 128>}]} {
    %c0 = arith.constant 0 : index
    %c0_0 = arith.constant 0 : index
    %0 = vector.load %arg1[%c0, %c0_0] : memref<16x128xf32, #tpu.memory_space<vmem>>, vector<16x128xf32>
    %1 = arith.truncf %0 : vector<16x128xf32> to vector<16x128xbf16>
    %c0_1 = arith.constant 0 : index
    %c0_2 = arith.constant 0 : index
    %2 = vector.load %arg2[%c0_1, %c0_2] : memref<128x512xbf16, #tpu.memory_space<vmem>>, vector<128x512xbf16>
    %cst = arith.constant dense<0.000000e+00> : vector<16x512xf32>
    %3 = tpu.matmul %1, %2, %cst {dimension_numbers = #tpu.dot_dimension_numbers<[1], [0], [0], [1], [0, 0, 1, 1], [], []>} : vector<16x128xbf16>, vector<128x512xbf16>, vector<16x512xf32> -> vector<16x512xf32>
    %c0_3 = arith.constant 0 : index
    %c0_4 = arith.constant 0 : index
    %4 = vector.load %arg3[%c0_3, %c0_4] : memref<1x512xf32, #tpu.memory_space<vmem>>, vector<1x512xf32>
    %5 = vector.broadcast %4 : vector<1x512xf32> to vector<16x512xf32>
    %6 = arith.addf %3, %5 : vector<16x512xf32>
    %cst_5 = arith.constant 0.000000e+00 : f32
    %7 = vector.broadcast %cst_5 : f32 to vector<16x512xf32>
    %8 = arith.cmpf ogt, %6, %7 : vector<16x512xf32>
    %cst_6 = arith.constant 2.000000e-01 : f32
    %9 = vector.broadcast %cst_6 : f32 to vector<16x512xf32>
    %10 = arith.mulf %9, %6 : vector<16x512xf32>
    %11 = arith.select %8, %6, %10 : vector<16x512xi1>, vector<16x512xf32>
    %c0_7 = arith.constant 0 : index
    %c0_8 = arith.constant 0 : index
    %12 = vector.load %arg4[%c0_7, %c0_8] : memref<1x512xf32, #tpu.memory_space<vmem>>, vector<1x512xf32>
    %c0_9 = arith.constant 0 : index
    %c0_10 = arith.constant 0 : index
    %13 = vector.load %arg5[%c0_9, %c0_10] : memref<1x512xf32, #tpu.memory_space<vmem>>, vector<1x512xf32>
    %cst_11 = arith.constant dense<0.000000e+00> : vector<16xf32>
    %14 = vector.multi_reduction <add>, %11, %cst_11 [1] : vector<16x512xf32> to vector<16xf32>
    %15 = vector.shape_cast %14 : vector<16xf32> to vector<16x1xf32>
    %cst_12 = arith.constant 5.120000e+02 : f32
    %16 = vector.broadcast %cst_12 : f32 to vector<16x1xf32>
    %17 = arith.divf %15, %16 : vector<16x1xf32>
    %18 = vector.broadcast %17 : vector<16x1xf32> to vector<16x512xf32>
    %19 = arith.subf %11, %18 : vector<16x512xf32>
    %20 = arith.mulf %19, %19 : vector<16x512xf32>
    %cst_13 = arith.constant dense<0.000000e+00> : vector<16xf32>
    %21 = vector.multi_reduction <add>, %20, %cst_13 [1] : vector<16x512xf32> to vector<16xf32>
    %22 = vector.shape_cast %21 : vector<16xf32> to vector<16x1xf32>
    %cst_14 = arith.constant 5.120000e+02 : f32
    %23 = vector.broadcast %cst_14 : f32 to vector<16x1xf32>
    %24 = arith.divf %22, %23 : vector<16x1xf32>
    %cst_15 = arith.constant 9.99999974E-6 : f32
    %25 = vector.broadcast %cst_15 : f32 to vector<16x1xf32>
    %26 = arith.addf %24, %25 : vector<16x1xf32>
    %27 = math.rsqrt %26 : vector<16x1xf32>
    %28 = vector.broadcast %27 : vector<16x1xf32> to vector<16x512xf32>
    %29 = arith.mulf %19, %28 : vector<16x512xf32>
    %30 = vector.broadcast %12 : vector<1x512xf32> to vector<16x512xf32>
    %31 = arith.mulf %29, %30 : vector<16x512xf32>
    %32 = vector.broadcast %13 : vector<1x512xf32> to vector<16x512xf32>
    %33 = arith.addf %31, %32 : vector<16x512xf32>
    %34 = arith.truncf %33 : vector<16x512xf32> to vector<16x512xbf16>
    %c0_16 = arith.constant 0 : index
    %c0_17 = arith.constant 0 : index
    %35 = vector.load %arg6[%c0_16, %c0_17] : memref<512x512xbf16, #tpu.memory_space<vmem>>, vector<512x512xbf16>
    %cst_18 = arith.constant dense<0.000000e+00> : vector<16x512xf32>
    %36 = tpu.matmul %34, %35, %cst_18 {dimension_numbers = #tpu.dot_dimension_numbers<[1], [0], [0], [1], [0, 0, 1, 1], [], []>} : vector<16x512xbf16>, vector<512x512xbf16>, vector<16x512xf32> -> vector<16x512xf32>
    %c0_19 = arith.constant 0 : index
    %c0_20 = arith.constant 0 : index
    %37 = vector.load %arg7[%c0_19, %c0_20] : memref<1x512xf32, #tpu.memory_space<vmem>>, vector<1x512xf32>
    %38 = vector.broadcast %37 : vector<1x512xf32> to vector<16x512xf32>
    %39 = arith.addf %36, %38 : vector<16x512xf32>
    %cst_21 = arith.constant 0.000000e+00 : f32
    %40 = vector.broadcast %cst_21 : f32 to vector<16x512xf32>
    %41 = arith.cmpf ogt, %39, %40 : vector<16x512xf32>
    %cst_22 = arith.constant 2.000000e-01 : f32
    %42 = vector.broadcast %cst_22 : f32 to vector<16x512xf32>
    %43 = arith.mulf %42, %39 : vector<16x512xf32>
    %44 = arith.select %41, %39, %43 : vector<16x512xi1>, vector<16x512xf32>
    %c0_23 = arith.constant 0 : index
    %c0_24 = arith.constant 0 : index
    %45 = vector.load %arg8[%c0_23, %c0_24] : memref<1x512xf32, #tpu.memory_space<vmem>>, vector<1x512xf32>
    %c0_25 = arith.constant 0 : index
    %c0_26 = arith.constant 0 : index
    %46 = vector.load %arg9[%c0_25, %c0_26] : memref<1x512xf32, #tpu.memory_space<vmem>>, vector<1x512xf32>
    %cst_27 = arith.constant dense<0.000000e+00> : vector<16xf32>
    %47 = vector.multi_reduction <add>, %44, %cst_27 [1] : vector<16x512xf32> to vector<16xf32>
    %48 = vector.shape_cast %47 : vector<16xf32> to vector<16x1xf32>
    %cst_28 = arith.constant 5.120000e+02 : f32
    %49 = vector.broadcast %cst_28 : f32 to vector<16x1xf32>
    %50 = arith.divf %48, %49 : vector<16x1xf32>
    %51 = vector.broadcast %50 : vector<16x1xf32> to vector<16x512xf32>
    %52 = arith.subf %44, %51 : vector<16x512xf32>
    %53 = arith.mulf %52, %52 : vector<16x512xf32>
    %cst_29 = arith.constant dense<0.000000e+00> : vector<16xf32>
    %54 = vector.multi_reduction <add>, %53, %cst_29 [1] : vector<16x512xf32> to vector<16xf32>
    %55 = vector.shape_cast %54 : vector<16xf32> to vector<16x1xf32>
    %cst_30 = arith.constant 5.120000e+02 : f32
    %56 = vector.broadcast %cst_30 : f32 to vector<16x1xf32>
    %57 = arith.divf %55, %56 : vector<16x1xf32>
    %cst_31 = arith.constant 9.99999974E-6 : f32
    %58 = vector.broadcast %cst_31 : f32 to vector<16x1xf32>
    %59 = arith.addf %57, %58 : vector<16x1xf32>
    %60 = math.rsqrt %59 : vector<16x1xf32>
    %61 = vector.broadcast %60 : vector<16x1xf32> to vector<16x512xf32>
    %62 = arith.mulf %52, %61 : vector<16x512xf32>
    %63 = vector.broadcast %45 : vector<1x512xf32> to vector<16x512xf32>
    %64 = arith.mulf %62, %63 : vector<16x512xf32>
    %65 = vector.broadcast %46 : vector<1x512xf32> to vector<16x512xf32>
    %66 = arith.addf %64, %65 : vector<16x512xf32>
    %67 = arith.truncf %66 : vector<16x512xf32> to vector<16x512xbf16>
    %c0_32 = arith.constant 0 : index
    %c0_33 = arith.constant 0 : index
    %68 = vector.load %arg10[%c0_32, %c0_33] : memref<512x128xbf16, #tpu.memory_space<vmem>>, vector<512x128xbf16>
    %cst_34 = arith.constant dense<0.000000e+00> : vector<16x128xf32>
    %69 = tpu.matmul %67, %68, %cst_34 {dimension_numbers = #tpu.dot_dimension_numbers<[1], [0], [0], [1], [0, 0, 1, 1], [], []>} : vector<16x512xbf16>, vector<512x128xbf16>, vector<16x128xf32> -> vector<16x128xf32>
    %c0_35 = arith.constant 0 : index
    %c0_36 = arith.constant 0 : index
    %70 = vector.load %arg11[%c0_35, %c0_36] : memref<1x128xf32, #tpu.memory_space<vmem>>, vector<1x128xf32>
    %71 = vector.broadcast %70 : vector<1x128xf32> to vector<16x128xf32>
    %72 = arith.addf %69, %71 : vector<16x128xf32>
    %73 = math.tanh %72 : vector<16x128xf32>
    %cst_37 = arith.constant 1.000000e-01 : f32
    %74 = vector.broadcast %cst_37 : f32 to vector<16x128xf32>
    %75 = arith.mulf %73, %74 : vector<16x128xf32>
    %c0_38 = arith.constant 0 : index
    %c0_39 = arith.constant 0 : index
    %76 = vector.load %arg12[%c0_38, %c0_39] : memref<16x128xf32, #tpu.memory_space<vmem>>, vector<16x128xf32>
    tpu.vector_store %arg12[%c0_38, %c0_39], %75 {strides = array<i32>} : memref<16x128xf32, #tpu.memory_space<vmem>>, vector<16x128xf32>,
    return
  }
  func.func @transform_0(%arg0: i32) -> (i32, i32) {
    %c0_i32 = arith.constant 0 : i32
    %c0_i32_0 = arith.constant 0 : i32
    return %arg0, %c0_i32 : i32, i32
  }
  func.func @transform_1(%arg0: i32) -> (i32, i32) {
    %c0_i32 = arith.constant 0 : i32
    %c0_i32_0 = arith.constant 0 : i32
    %c0_i32_1 = arith.constant 0 : i32
    return %c0_i32, %c0_i32_0 : i32, i32
  }
  func.func @transform_2(%arg0: i32) -> (i32, i32) {
    %c0_i32 = arith.constant 0 : i32
    %c0_i32_0 = arith.constant 0 : i32
    %c0_i32_1 = arith.constant 0 : i32
    return %c0_i32, %c0_i32_0 : i32, i32
  }
  func.func @transform_3(%arg0: i32) -> (i32, i32) {
    %c0_i32 = arith.constant 0 : i32
    %c0_i32_0 = arith.constant 0 : i32
    %c0_i32_1 = arith.constant 0 : i32
    return %c0_i32, %c0_i32_0 : i32, i32
  }
  func.func @transform_4(%arg0: i32) -> (i32, i32) {
    %c0_i32 = arith.constant 0 : i32
    %c0_i32_0 = arith.constant 0 : i32
    %c0_i32_1 = arith.constant 0 : i32
    return %c0_i32, %c0_i32_0 : i32, i32
  }
  func.func @transform_5(%arg0: i32) -> (i32, i32) {
    %c0_i32 = arith.constant 0 : i32
    %c0_i32_0 = arith.constant 0 : i32
    %c0_i32_1 = arith.constant 0 : i32
    return %c0_i32, %c0_i32_0 : i32, i32
  }
  func.func @transform_6(%arg0: i32) -> (i32, i32) {
    %c0_i32 = arith.constant 0 : i32
    %c0_i32_0 = arith.constant 0 : i32
    %c0_i32_1 = arith.constant 0 : i32
    return %c0_i32, %c0_i32_0 : i32, i32
  }
  func.func @transform_7(%arg0: i32) -> (i32, i32) {
    %c0_i32 = arith.constant 0 : i32
    %c0_i32_0 = arith.constant 0 : i32
    %c0_i32_1 = arith.constant 0 : i32
    return %c0_i32, %c0_i32_0 : i32, i32
  }
  func.func @transform_8(%arg0: i32) -> (i32, i32) {
    %c0_i32 = arith.constant 0 : i32
    %c0_i32_0 = arith.constant 0 : i32
    %c0_i32_1 = arith.constant 0 : i32
    return %c0_i32, %c0_i32_0 : i32, i32
  }
  func.func @transform_9(%arg0: i32) -> (i32, i32) {
    %c0_i32 = arith.constant 0 : i32
    %c0_i32_0 = arith.constant 0 : i32
    %c0_i32_1 = arith.constant 0 : i32
    return %c0_i32, %c0_i32_0 : i32, i32
  }
  func.func @transform_10(%arg0: i32) -> (i32, i32) {
    %c0_i32 = arith.constant 0 : i32
    %c0_i32_0 = arith.constant 0 : i32
    %c0_i32_1 = arith.constant 0 : i32
    return %c0_i32, %c0_i32_0 : i32, i32
  }
  func.func @transform_11(%arg0: i32) -> (i32, i32) {
    %c0_i32 = arith.constant 0 : i32
    %c0_i32_0 = arith.constant 0 : i32
    return %arg0, %c0_i32 : i32, i32
  }
}

</mosaic_0001>

<llo_original>
// kernel: tpu_custom_call.1
$region0: #{tpu_custom_call.1}
  #allocation0 [shape = 'u32[]', space=smem, size = 0x4, offset = 0x4, fixed_abs, tag = 'smem constant byte address 0x4 - core index']
  #allocation1 [shape = 'u32[144,128]{1,0:T(1,128)}', space=vmem, size = 0x12000, scoped, tag = 'internal scratch']
  %s0 = inlined_call_operand.hbm [shape: f32[16,128], index: 0, kind: input, shape index: {}]
  %s1 = inlined_call_operand.hbm [shape: bf16[128,512], index: 1, kind: input, shape index: {}]
  %s2 = inlined_call_operand.vmem [shape: f32[1,512], index: 2, kind: input, shape index: {}]
  %s3 = inlined_call_operand.vmem [shape: f32[1,512], index: 3, kind: input, shape index: {}]
  %s4 = inlined_call_operand.vmem [shape: f32[1,512], index: 4, kind: input, shape index: {}]
  %s5 = inlined_call_operand.hbm [shape: bf16[512,512], index: 5, kind: input, shape index: {}]
  %s6 = inlined_call_operand.vmem [shape: f32[1,512], index: 6, kind: input, shape index: {}]
  %s7 = inlined_call_operand.vmem [shape: f32[1,512], index: 7, kind: input, shape index: {}]
  %s8 = inlined_call_operand.vmem [shape: f32[1,512], index: 8, kind: input, shape index: {}]
  %s9 = inlined_call_operand.hbm [shape: bf16[512,128], index: 9, kind: input, shape index: {}]
  %s10 = inlined_call_operand.vmem [shape: f32[1,128], index: 10, kind: input, shape index: {}]
  %s11 = inlined_call_operand.hbm [shape: f32[16,128], index: 11, kind: output, shape index: {}]
  %s12 = sld [smem:[#allocation0]]
  $region70: #{tpu_custom_call.1} parent=0
    _
  %s14 = ssub.s32 1, %s12
  %s15 = scalar_select 0, %s14, %s12
  $region1: #{tpu_custom_call.1} parent=0
    #allocation2 [shape = 'u8[8192]{0}', space=vmem, size = 0x2000, scoped, tag = 'input window, operand 0, single buffered']
    #allocation3 [shape = 's32[1]{0}', space=sflag, size = 0x4, scoped, tag = 'scoped memory for tpu_custom_call.1']
    #allocation4 [shape = 's32[1]{0}', space=sflag, size = 0x4, scoped, tag = 'scoped memory for tpu_custom_call.1']
    #allocation5 [shape = 'u8[131072]{0}', space=vmem, size = 0x20000, scoped, tag = 'input window, operand 1, single buffered']
    #allocation6 [shape = 's32[1]{0}', space=sflag, size = 0x4, scoped, tag = 'scoped memory for tpu_custom_call.1']
    #allocation7 [shape = 'u8[524288]{0}', space=vmem, size = 0x80000, scoped, tag = 'input window, operand 5, single buffered']
    #allocation8 [shape = 'u8[131072]{0}', space=vmem, size = 0x20000, scoped, tag = 'input window, operand 9, single buffered']
    #allocation9 [shape = 's32[1]{0}', space=sflag, size = 0x4, scoped, tag = 'scoped memory for tpu_custom_call.1']
    #allocation10 [shape = 'u8[8192]{0}', space=vmem, size = 0x2000, scoped, tag = 'output window, operand 0, single buffered']
    %16 = vsyncpa [#allocation3], 0
    %17 = vsyncpa [#allocation6], 0
    %18 = vsyncpa [#allocation9], 0
    %19 = vsyncpa [#allocation4], 0
    // Predicated region
    $region2: #{tpu_custom_call.1} parent=1 // pred_check
      _
    $region3: #{tpu_custom_call.1} parent=1 // pred_check_branch
      %21 = sbr.rel (0) target = $region5
    $region4: #{tpu_custom_call.1} parent=1 // pred_region
      %s23 = ssub.s32 256, 256
      %24 = vsyncadd [#allocation3], %s23
      %s25 = sshll.u32 [#allocation2], 4
      %s26 = int_to_ptr.vmem [resolvable:$true] %s25
      %31 = dma.hbm_to_vmem [thread:$0]  %s0, 256, %s26, [#allocation3], 128, 128, 8
    $region5: #{tpu_custom_call.1} parent=1 // pred_fallthru
      _
    // Predicated region
    $region6: #{tpu_custom_call.1} parent=1 // pred_check
      _
    $region7: #{tpu_custom_call.1} parent=1 // pred_check_branch
      %33 = sbr.rel (0) target = $region9
    $region8: #{tpu_custom_call.1} parent=1 // pred_region
      %s35 = ssub.s32 4096, 4096
      %36 = vsyncadd [#allocation6], %s35
      %s37 = sshll.u32 [#allocation5], 4
      %s38 = int_to_ptr.vmem [resolvable:$true] %s37
      %43 = dma.hbm_to_vmem [thread:$0]  %s1, 4096, %s38, [#allocation6], 256, 256, 16
    $region9: #{tpu_custom_call.1} parent=1 // pred_fallthru
      _
    // Predicated region
    $region10: #{tpu_custom_call.1} parent=1 // pred_check
      _
    $region11: #{tpu_custom_call.1} parent=1 // pred_check_branch
      %45 = sbr.rel (0) target = $region13
    $region12: #{tpu_custom_call.1} parent=1 // pred_region
      _
    $region13: #{tpu_custom_call.1} parent=1 // pred_fallthru
      _
    // Predicated region
    $region14: #{tpu_custom_call.1} parent=1 // pred_check
      _
    $region15: #{tpu_custom_call.1} parent=1 // pred_check_branch
      %47 = sbr.rel (0) target = $region17
    $region16: #{tpu_custom_call.1} parent=1 // pred_region
      _
    $region17: #{tpu_custom_call.1} parent=1 // pred_fallthru
      _
    // Predicated region
    $region18: #{tpu_custom_call.1} parent=1 // pred_check
      _
    $region19: #{tpu_custom_call.1} parent=1 // pred_check_branch
      %49 = sbr.rel (0) target = $region21
    $region20: #{tpu_custom_call.1} parent=1 // pred_region
      _
    $region21: #{tpu_custom_call.1} parent=1 // pred_fallthru
      _
    // Predicated region
    $region22: #{tpu_custom_call.1} parent=1 // pred_check
      _
    $region23: #{tpu_custom_call.1} parent=1 // pred_check_branch
      %51 = sbr.rel (0) target = $region25
    $region24: #{tpu_custom_call.1} parent=1 // pred_region
      %s53 = ssub.s32 16384, 16384
      %54 = vsyncadd [#allocation6], %s53
      %s55 = sshll.u32 [#allocation7], 4
      %s56 = int_to_ptr.vmem [resolvable:$true] %s55
      %61 = dma.hbm_to_vmem [thread:$0]  %s5, 16384, %s56, [#allocation6], 256, 256, 16
    $region25: #{tpu_custom_call.1} parent=1 // pred_fallthru
      _
    // Predicated region
    $region26: #{tpu_custom_call.1} parent=1 // pred_check
      _
    $region27: #{tpu_custom_call.1} parent=1 // pred_check_branch
      %63 = sbr.rel (0) target = $region29
    $region28: #{tpu_custom_call.1} parent=1 // pred_region
      _
    $region29: #{tpu_custom_call.1} parent=1 // pred_fallthru
      _
    // Predicated region
    $region30: #{tpu_custom_call.1} parent=1 // pred_check
      _
    $region31: #{tpu_custom_call.1} parent=1 // pred_check_branch
      %65 = sbr.rel (0) target = $region33
    $region32: #{tpu_custom_call.1} parent=1 // pred_region
      _
    $region33: #{tpu_custom_call.1} parent=1 // pred_fallthru
      _
    // Predicated region
    $region34: #{tpu_custom_call.1} parent=1 // pred_check
      _
    $region35: #{tpu_custom_call.1} parent=1 // pred_check_branch
      %67 = sbr.rel (0) target = $region37
    $region36: #{tpu_custom_call.1} parent=1 // pred_region
      _
    $region37: #{tpu_custom_call.1} parent=1 // pred_fallthru
      _
    // Predicated region
    $region38: #{tpu_custom_call.1} parent=1 // pred_check
      _
    $region39: #{tpu_custom_call.1} parent=1 // pred_check_branch
      %69 = sbr.rel (0) target = $region41
    $region40: #{tpu_custom_call.1} parent=1 // pred_region
      %s71 = ssub.s32 4096, 4096
      %72 = vsyncadd [#allocation9], %s71
      %s73 = sshll.u32 [#allocation8], 4
      %s74 = int_to_ptr.vmem [resolvable:$true] %s73
      %79 = dma.hbm_to_vmem [thread:$0]  %s9, 4096, %s74, [#allocation9], 64, 64, 4
    $region41: #{tpu_custom_call.1} parent=1 // pred_fallthru
      _
    // Predicated region
    $region42: #{tpu_custom_call.1} parent=1 // pred_check
      _
    $region43: #{tpu_custom_call.1} parent=1 // pred_check_branch
      %81 = sbr.rel (0) target = $region45
    $region44: #{tpu_custom_call.1} parent=1 // pred_region
      _
    $region45: #{tpu_custom_call.1} parent=1 // pred_fallthru
      _
    // Predicated region
    $region46: #{tpu_custom_call.1} parent=1 // pred_check
      _
    $region47: #{tpu_custom_call.1} parent=1 // pred_check_branch
      %83 = sbr.rel (0) target = $region49
    $region48: #{tpu_custom_call.1} parent=1 // pred_region
      %84 = dma.done [#allocation3], 256
    $region49: #{tpu_custom_call.1} parent=1 // pred_fallthru
      _
    // Predicated region
    $region50: #{tpu_custom_call.1} parent=1 // pred_check
      _
    $region51: #{tpu_custom_call.1} parent=1 // pred_check_branch
      %86 = sbr.rel (0) target = $region53
    $region52: #{tpu_custom_call.1} parent=1 // pred_region
      %87 = dma.done [#allocation6], 4096
    $region53: #{tpu_custom_call.1} parent=1 // pred_fallthru
      _
    // Predicated region
    $region54: #{tpu_custom_call.1} parent=1 // pred_check
      _
    $region55: #{tpu_custom_call.1} parent=1 // pred_check_branch
      %89 = sbr.rel (0) target = $region57
    $region56: #{tpu_custom_call.1} parent=1 // pred_region
      %90 = dma.done [#allocation6], 16384
    $region57: #{tpu_custom_call.1} parent=1 // pred_fallthru
      _
    // Predicated region
    $region58: #{tpu_custom_call.1} parent=1 // pred_check
      _
    $region59: #{tpu_custom_call.1} parent=1 // pred_check_branch
      %92 = sbr.rel (0) target = $region61
    $region60: #{tpu_custom_call.1} parent=1 // pred_region
      %93 = dma.done [#allocation9], 4096
    $region61: #{tpu_custom_call.1} parent=1 // pred_fallthru
      _
    %v95 = vld [vmem:[#allocation2] sm:$0xff]
    %v96 = vld [vmem:[#allocation2 + $0x8] sm:$0xff]
    %v97 = vpack.c.bf16 %v96, %v95
    %v98 = vld [vmem:[#allocation5] sm:$0xff]
    %v99 = vld [vmem:[#allocation5 + $0x8] sm:$0xff]
    %v100 = vld [vmem:[#allocation5 + $0x10] sm:$0xff]
    %v101 = vld [vmem:[#allocation5 + $0x18] sm:$0xff]
    %v102 = vld [vmem:[#allocation5 + $0x20] sm:$0xff]
    %v103 = vld [vmem:[#allocation5 + $0x28] sm:$0xff]
    %v104 = vld [vmem:[#allocation5 + $0x30] sm:$0xff]
    %v105 = vld [vmem:[#allocation5 + $0x38] sm:$0xff]
    %v106 = vld [vmem:[#allocation5 + $0x40] sm:$0xff]
    %v107 = vld [vmem:[#allocation5 + $0x48] sm:$0xff]
    %v108 = vld [vmem:[#allocation5 + $0x50] sm:$0xff]
    %v109 = vld [vmem:[#allocation5 + $0x58] sm:$0xff]
    %v110 = vld [vmem:[#allocation5 + $0x60] sm:$0xff]
    %v111 = vld [vmem:[#allocation5 + $0x68] sm:$0xff]
    %v112 = vld [vmem:[#allocation5 + $0x70] sm:$0xff]
    %v113 = vld [vmem:[#allocation5 + $0x78] sm:$0xff]
    %v114 = vld [vmem:[#allocation5 + $0x80] sm:$0xff]
    %v115 = vld [vmem:[#allocation5 + $0x88] sm:$0xff]
    %v116 = vld [vmem:[#allocation5 + $0x90] sm:$0xff]
    %v117 = vld [vmem:[#allocation5 + $0x98] sm:$0xff]
    %v118 = vld [vmem:[#allocation5 + $0xa0] sm:$0xff]
    %v119 = vld [vmem:[#allocation5 + $0xa8] sm:$0xff]
    %v120 = vld [vmem:[#allocation5 + $0xb0] sm:$0xff]
    %v121 = vld [vmem:[#allocation5 + $0xb8] sm:$0xff]
    %v122 = vld [vmem:[#allocation5 + $0xc0] sm:$0xff]
    %v123 = vld [vmem:[#allocation5 + $0xc8] sm:$0xff]
    %v124 = vld [vmem:[#allocation5 + $0xd0] sm:$0xff]
    %v125 = vld [vmem:[#allocation5 + $0xd8] sm:$0xff]
    %v126 = vld [vmem:[#allocation5 + $0xe0] sm:$0xff]
    %v127 = vld [vmem:[#allocation5 + $0xe8] sm:$0xff]
    %v128 = vld [vmem:[#allocation5 + $0xf0] sm:$0xff]
    %v129 = vld [vmem:[#allocation5 + $0xf8] sm:$0xff]
    %v130 = vld [vmem:[%s2] sm:$0xf]
    %v132 = vlaneseq
    %v133 = vshrl.u32 %v132, 7
    %v134 = vsub.s32 0, %v133
    %v135 = vrot.slane %v130, %v134
    %v136 = vlaneseq
    %v137 = vshrl.u32 %v136, 7
    %v138 = vsub.s32 1, %v137
    %v139 = vrot.slane %v130, %v138
    %v140 = vlaneseq
    %v141 = vshrl.u32 %v140, 7
    %v142 = vsub.s32 2, %v141
    %v143 = vrot.slane %v130, %v142
    %v144 = vlaneseq
    %v145 = vshrl.u32 %v144, 7
    %v146 = vsub.s32 3, %v145
    %v147 = vrot.slane %v130, %v146
    %v184 = vunpack.c.l.b16 %v98
    %v185 = vunpack.c.h.b16 %v98
    %v186 = vunpack.c.l.b16 %v99
    %v187 = vunpack.c.h.b16 %v99
    %v188 = vunpack.c.l.b16 %v100
    %v189 = vunpack.c.h.b16 %v100
    %v190 = vunpack.c.l.b16 %v101
    %v191 = vunpack.c.h.b16 %v101
    %v192 = vunpack.c.l.b16 %v102
    %v193 = vunpack.c.h.b16 %v102
    %v194 = vunpack.c.l.b16 %v103
    %v195 = vunpack.c.h.b16 %v103
    %v196 = vunpack.c.l.b16 %v104
    %v197 = vunpack.c.h.b16 %v104
    %v198 = vunpack.c.l.b16 %v105
    %v199 = vunpack.c.h.b16 %v105
    %v200 = vunpack.c.l.b16 %v106
    %v201 = vunpack.c.h.b16 %v106
    %v202 = vunpack.c.l.b16 %v107
    %v203 = vunpack.c.h.b16 %v107
    %v204 = vunpack.c.l.b16 %v108
    %v205 = vunpack.c.h.b16 %v108
    %v206 = vunpack.c.l.b16 %v109
    %v207 = vunpack.c.h.b16 %v109
    %v208 = vunpack.c.l.b16 %v110
    %v209 = vunpack.c.h.b16 %v110
    %v210 = vunpack.c.l.b16 %v111
    %v211 = vunpack.c.h.b16 %v111
    %v212 = vunpack.c.l.b16 %v112
    %v213 = vunpack.c.h.b16 %v112
    %v214 = vunpack.c.l.b16 %v113
    %v215 = vunpack.c.h.b16 %v113
    %v216 = vunpack.c.l.b16 %v114
    %v217 = vunpack.c.h.b16 %v114
    %v218 = vunpack.c.l.b16 %v115
    %v219 = vunpack.c.h.b16 %v115
    %v220 = vunpack.c.l.b16 %v116
    %v221 = vunpack.c.h.b16 %v116
    %v222 = vunpack.c.l.b16 %v117
    %v223 = vunpack.c.h.b16 %v117
    %v224 = vunpack.c.l.b16 %v118
    %v225 = vunpack.c.h.b16 %v118
    %v226 = vunpack.c.l.b16 %v119
    %v227 = vunpack.c.h.b16 %v119
    %v228 = vunpack.c.l.b16 %v120
    %v229 = vunpack.c.h.b16 %v120
    %v230 = vunpack.c.l.b16 %v121
    %v231 = vunpack.c.h.b16 %v121
    %v232 = vunpack.c.l.b16 %v122
    %v233 = vunpack.c.h.b16 %v122
    %v234 = vunpack.c.l.b16 %v123
    %v235 = vunpack.c.h.b16 %v123
    %v236 = vunpack.c.l.b16 %v124
    %v237 = vunpack.c.h.b16 %v124
    %v238 = vunpack.c.l.b16 %v125
    %v239 = vunpack.c.h.b16 %v125
    %v240 = vunpack.c.l.b16 %v126
    %v241 = vunpack.c.h.b16 %v126
    %v242 = vunpack.c.l.b16 %v127
    %v243 = vunpack.c.h.b16 %v127
    %v244 = vunpack.c.l.b16 %v128
    %v245 = vunpack.c.h.b16 %v128
    %v246 = vunpack.c.l.b16 %v129
    %v247 = vunpack.c.h.b16 %v129
    %v248 = vpack.c.b16 %v188, %v184
    %v249 = vpack.c.b16 %v189, %v185
    %v250 = vpack.c.b16 %v190, %v186
    %v251 = vpack.c.b16 %v191, %v187
    %v252 = vpack.c.b16 %v196, %v192
    %v253 = vpack.c.b16 %v197, %v193
    %v254 = vpack.c.b16 %v198, %v194
    %v255 = vpack.c.b16 %v199, %v195
    %v256 = vpack.c.b16 %v204, %v200
    %v257 = vpack.c.b16 %v205, %v201
    %v258 = vpack.c.b16 %v206, %v202
    %v259 = vpack.c.b16 %v207, %v203
    %v260 = vpack.c.b16 %v212, %v208
    %v261 = vpack.c.b16 %v213, %v209
    %v262 = vpack.c.b16 %v214, %v210
    %v263 = vpack.c.b16 %v215, %v211
    %v264 = vpack.c.b16 %v220, %v216
    %v265 = vpack.c.b16 %v221, %v217
    %v266 = vpack.c.b16 %v222, %v218
    %v267 = vpack.c.b16 %v223, %v219
    %v268 = vpack.c.b16 %v228, %v224
    %v269 = vpack.c.b16 %v229, %v225
    %v270 = vpack.c.b16 %v230, %v226
    %v271 = vpack.c.b16 %v231, %v227
    %v272 = vpack.c.b16 %v236, %v232
    %v273 = vpack.c.b16 %v237, %v233
    %v274 = vpack.c.b16 %v238, %v234
    %v275 = vpack.c.b16 %v239, %v235
    %v276 = vpack.c.b16 %v244, %v240
    %v277 = vpack.c.b16 %v245, %v241
    %v278 = vpack.c.b16 %v246, %v242
    %v279 = vpack.c.b16 %v247, %v243
    %312 = vmatprep.subr.bf16.mxu0 %v249
    %313 = vmatpush1.bf16.msra.mxu0 %v248
    %314 = vmatprep.subr.bf16.mxu0 %v253
    %315 = vmatpush1.bf16.msra.mxu0 %v252
    %316 = vmatprep.subr.bf16.mxu0 %v257
    %317 = vmatpush1.bf16.msra.mxu0 %v256
    %318 = vmatprep.subr.bf16.mxu0 %v261
    %319 = vmatpush1.bf16.msra.mxu0 %v260
    %320 = vmatprep.subr.bf16.mxu0 %v265
    %321 = vmatpush1.bf16.msra.mxu0 %v264
    %322 = vmatprep.subr.bf16.mxu0 %v269
    %323 = vmatpush1.bf16.msra.mxu0 %v268
    %324 = vmatprep.subr.bf16.mxu0 %v273
    %325 = vmatpush1.bf16.msra.mxu0 %v272
    %326 = vmatprep.subr.bf16.mxu0 %v277
    %327 = vmatpush1.bf16.msra.mxu0 %v276
    %328 = vmatprep.subr.bf16.mxu0 0
    %329 = vmatpush1.bf16.msra.mxu0 0
    %330 = vmatprep.subr.bf16.mxu0 0
    %331 = vmatpush1.bf16.msra.mxu0 0
    %332 = vmatprep.subr.bf16.mxu0 0
    %333 = vmatpush1.bf16.msra.mxu0 0
    %334 = vmatprep.subr.bf16.mxu0 0
    %335 = vmatpush1.bf16.msra.mxu0 0
    %336 = vmatprep.subr.bf16.mxu0 0
    %337 = vmatpush1.bf16.msra.mxu0 0
    %338 = vmatprep.subr.bf16.mxu0 0
    %339 = vmatpush1.bf16.msra.mxu0 0
    %340 = vmatprep.subr.bf16.mxu0 0
    %341 = vmatpush1.bf16.msra.mxu0 0
    %342 = vmatprep.subr.bf16.mxu0 0
    %343 = vmatpush1.bf16.msra.mxu0 0
    %344 = vmatprep.mubr.bf16.mxu0 0
    %345 = vmatmul.mubr.bf16.gmra.mrb[0].mxu0 %v97
    %v346 = vpop.f32.mrb[0].mxu0
    %v347 = vadd.f32 %v135, %v346
    %v348 = vpop.f32.mrb[0].mxu0
    %v349 = vadd.f32 %v139, %v348
    %v350 = vpop.f32.mrb[0].mxu0
    %v351 = vadd.f32 %v135, %v350
    %v352 = vpop.f32.mrb[0].mxu0
    %v353 = vadd.f32 %v139, %v352
    %354 = vdwg.mxu0
    %355 = vmatprep.subr.bf16.mxu0 %v251
    %356 = vmatpush1.bf16.msra.mxu0 %v250
    %357 = vmatprep.subr.bf16.mxu0 %v255
    %358 = vmatpush1.bf16.msra.mxu0 %v254
    %359 = vmatprep.subr.bf16.mxu0 %v259
    %360 = vmatpush1.bf16.msra.mxu0 %v258
    %361 = vmatprep.subr.bf16.mxu0 %v263
    %362 = vmatpush1.bf16.msra.mxu0 %v262
    %363 = vmatprep.subr.bf16.mxu0 %v267
    %364 = vmatpush1.bf16.msra.mxu0 %v266
    %365 = vmatprep.subr.bf16.mxu0 %v271
    %366 = vmatpush1.bf16.msra.mxu0 %v270
    %367 = vmatprep.subr.bf16.mxu0 %v275
    %368 = vmatpush1.bf16.msra.mxu0 %v274
    %369 = vmatprep.subr.bf16.mxu0 %v279
    %370 = vmatpush1.bf16.msra.mxu0 %v278
    %371 = vmatprep.subr.bf16.mxu0 0
    %372 = vmatpush1.bf16.msra.mxu0 0
    %373 = vmatprep.subr.bf16.mxu0 0
    %374 = vmatpush1.bf16.msra.mxu0 0
    %375 = vmatprep.subr.bf16.mxu0 0
    %376 = vmatpush1.bf16.msra.mxu0 0
    %377 = vmatprep.subr.bf16.mxu0 0
    %378 = vmatpush1.bf16.msra.mxu0 0
    %379 = vmatprep.subr.bf16.mxu0 0
    %380 = vmatpush1.bf16.msra.mxu0 0
    %381 = vmatprep.subr.bf16.mxu0 0
    %382 = vmatpush1.bf16.msra.mxu0 0
    %383 = vmatprep.subr.bf16.mxu0 0
    %384 = vmatpush1.bf16.msra.mxu0 0
    %385 = vmatprep.subr.bf16.mxu0 0
    %386 = vmatpush1.bf16.msra.mxu0 0
    %387 = vmatprep.mubr.bf16.mxu0 0
    %388 = vmatmul.mubr.bf16.gmra.mrb[0].mxu0 %v97
    %v389 = vpop.f32.mrb[0].mxu0
    %v390 = vadd.f32 %v143, %v389
    %v391 = vpop.f32.mrb[0].mxu0
    %v392 = vadd.f32 %v147, %v391
    %v393 = vpop.f32.mrb[0].mxu0
    %v394 = vadd.f32 %v143, %v393
    %v395 = vpop.f32.mrb[0].mxu0
    %v396 = vadd.f32 %v147, %v395
    %397 = vdwg.mxu0
    %vm398 = vcmp.gt.f32.partialorder %v347, 0.0
    %vm399 = vcmp.gt.f32.partialorder %v349, 0.0
    %vm400 = vcmp.gt.f32.partialorder %v390, 0.0
    %vm401 = vcmp.gt.f32.partialorder %v392, 0.0
    %vm402 = vcmp.gt.f32.partialorder %v351, 0.0
    %vm403 = vcmp.gt.f32.partialorder %v353, 0.0
    %vm404 = vcmp.gt.f32.partialorder %v394, 0.0
    %vm405 = vcmp.gt.f32.partialorder %v396, 0.0
    %v406 = vmul.f32 %v347, 0.2
    %v407 = vmul.f32 %v349, 0.2
    %v408 = vmul.f32 %v390, 0.2
    %v409 = vmul.f32 %v392, 0.2
    %v410 = vmul.f32 %v351, 0.2
    %v411 = vmul.f32 %v353, 0.2
    %v412 = vmul.f32 %v394, 0.2
    %v413 = vmul.f32 %v396, 0.2
    %v414 = vsel %vm398, %v347, %v406
    %v415 = vsel %vm399, %v349, %v407
    %v416 = vsel %vm400, %v390, %v408
    %v417 = vsel %vm401, %v392, %v409
    %v418 = vsel %vm402, %v351, %v410
    %v419 = vsel %vm403, %v353, %v411
    %v420 = vsel %vm404, %v394, %v412
    %v421 = vsel %vm405, %v396, %v413
    %v422 = vld [vmem:[%s3] sm:$0xf]
    %v423 = vld [vmem:[%s4] sm:$0xf]
    %v424 = vadd.f32 %v414, %v415
    %v425 = vadd.f32 %v424, %v416
    %v426 = vadd.f32 %v425, %v417
    %427 = vadd.xlane.f32.xlu0 %v426
    %v428 = vpop.xlane.xlu0 %427
    %v429 = vadd.f32 %v418, %v419
    %v430 = vadd.f32 %v429, %v420
    %v431 = vadd.f32 %v430, %v421
    %432 = vadd.xlane.f32.xlu0 %v431
    %v433 = vpop.xlane.xlu0 %432
    %v434 = vrcp.pop 512.0
    %v435 = vmul.f32 %v428, %v434
    %v436 = vmul.f32 %v433, %v434
    %v437 = vsub.f32 %v414, %v435
    %v438 = vsub.f32 %v415, %v435
    %v439 = vsub.f32 %v416, %v435
    %v440 = vsub.f32 %v417, %v435
    %v441 = vsub.f32 %v418, %v436
    %v442 = vsub.f32 %v419, %v436
    %v443 = vsub.f32 %v420, %v436
    %v444 = vsub.f32 %v421, %v436
    %v445 = vmul.f32 %v437, %v437
    %v446 = vmul.f32 %v438, %v438
    %v447 = vmul.f32 %v439, %v439
    %v448 = vmul.f32 %v440, %v440
    %v449 = vmul.f32 %v441, %v441
    %v450 = vmul.f32 %v442, %v442
    %v451 = vmul.f32 %v443, %v443
    %v452 = vmul.f32 %v444, %v444
    %v453 = vadd.f32 %v445, %v446
    %v454 = vadd.f32 %v453, %v447
    %v455 = vadd.f32 %v454, %v448
    %456 = vadd.xlane.f32.xlu0 %v455
    %v457 = vpop.xlane.xlu0 %456
    %v458 = vadd.f32 %v449, %v450
    %v459 = vadd.f32 %v458, %v451
    %v460 = vadd.f32 %v459, %v452
    %461 = vadd.xlane.f32.xlu0 %v460
    %v462 = vpop.xlane.xlu0 %461
    %v463 = vmul.f32 %v457, %v434
    %v464 = vmul.f32 %v462, %v434
    %v465 = vadd.f32 %v463, 1e-05
    %v466 = vadd.f32 %v464, 1e-05
    %v467 = vrsqrt.pop %v465
    %v468 = vrsqrt.pop %v466
    %v469 = vmul.f32 %v437, %v467
    %v470 = vmul.f32 %v438, %v467
    %v471 = vmul.f32 %v439, %v467
    %v472 = vmul.f32 %v440, %v467
    %v473 = vmul.f32 %v441, %v468
    %v474 = vmul.f32 %v442, %v468
    %v475 = vmul.f32 %v443, %v468
    %v476 = vmul.f32 %v444, %v468
    %v478 = vlaneseq
    %v479 = vshrl.u32 %v478, 7
    %v480 = vsub.s32 0, %v479
    %v481 = vrot.slane %v422, %v480
    %v482 = vlaneseq
    %v483 = vshrl.u32 %v482, 7
    %v484 = vsub.s32 1, %v483
    %v485 = vrot.slane %v422, %v484
    %v486 = vlaneseq
    %v487 = vshrl.u32 %v486, 7
    %v488 = vsub.s32 2, %v487
    %v489 = vrot.slane %v422, %v488
    %v490 = vlaneseq
    %v491 = vshrl.u32 %v490, 7
    %v492 = vsub.s32 3, %v491
    %v493 = vrot.slane %v422, %v492
    %v498 = vmul.f32 %v469, %v481
    %v499 = vmul.f32 %v470, %v485
    %v500 = vmul.f32 %v471, %v489
    %v501 = vmul.f32 %v472, %v493
    %v502 = vmul.f32 %v473, %v481
    %v503 = vmul.f32 %v474, %v485
    %v504 = vmul.f32 %v475, %v489
    %v505 = vmul.f32 %v476, %v493
    %v507 = vlaneseq
    %v508 = vshrl.u32 %v507, 7
    %v509 = vsub.s32 0, %v508
    %v510 = vrot.slane %v423, %v509
    %v511 = vlaneseq
    %v512 = vshrl.u32 %v511, 7
    %v513 = vsub.s32 1, %v512
    %v514 = vrot.slane %v423, %v513
    %v515 = vlaneseq
    %v516 = vshrl.u32 %v515, 7
    %v517 = vsub.s32 2, %v516
    %v518 = vrot.slane %v423, %v517
    %v519 = vlaneseq
    %v520 = vshrl.u32 %v519, 7
    %v521 = vsub.s32 3, %v520
    %v522 = vrot.slane %v423, %v521
    %v527 = vadd.f32 %v498, %v510
    %v528 = vadd.f32 %v499, %v514
    %v529 = vadd.f32 %v500, %v518
    %v530 = vadd.f32 %v501, %v522
    %v531 = vadd.f32 %v502, %v510
    %v532 = vadd.f32 %v503, %v514
    %v533 = vadd.f32 %v504, %v518
    %v534 = vadd.f32 %v505, %v522
    %v535 = vpack.c.bf16 %v531, %v527
    %v536 = vpack.c.bf16 %v532, %v528
    %v537 = vpack.c.bf16 %v533, %v529
    %v538 = vpack.c.bf16 %v534, %v530
    %v539 = vld [vmem:[#allocation7] sm:$0xff]
    %v540 = vld [vmem:[#allocation7 + $0x8] sm:$0xff]
    %v541 = vld [vmem:[#allocation7 + $0x10] sm:$0xff]
    %v542 = vld [vmem:[#allocation7 + $0x18] sm:$0xff]
    %v543 = vld [vmem:[#allocation7 + $0x20] sm:$0xff]
    %v544 = vld [vmem:[#allocation7 + $0x28] sm:$0xff]
    %v545 = vld [vmem:[#allocation7 + $0x30] sm:$0xff]
    %v546 = vld [vmem:[#allocation7 + $0x38] sm:$0xff]
    %v547 = vld [vmem:[#allocation7 + $0x40] sm:$0xff]
    %v548 = vld [vmem:[#allocation7 + $0x48] sm:$0xff]
    %v549 = vld [vmem:[#allocation7 + $0x50] sm:$0xff]
    %v550 = vld [vmem:[#allocation7 + $0x58] sm:$0xff]
    %v551 = vld [vmem:[#allocation7 + $0x60] sm:$0xff]
    %v552 = vld [vmem:[#allocation7 + $0x68] sm:$0xff]
    %v553 = vld [vmem:[#allocation7 + $0x70] sm:$0xff]
    %v554 = vld [vmem:[#allocation7 + $0x78] sm:$0xff]
    %v555 = vld [vmem:[#allocation7 + $0x80] sm:$0xff]
    %v556 = vld [vmem:[#allocation7 + $0x88] sm:$0xff]
    %v557 = vld [vmem:[#allocation7 + $0x90] sm:$0xff]
    %v558 = vld [vmem:[#allocation7 + $0x98] sm:$0xff]
    %v559 = vld [vmem:[#allocation7 + $0xa0] sm:$0xff]
    %v560 = vld [vmem:[#allocation7 + $0xa8] sm:$0xff]
    %v561 = vld [vmem:[#allocation7 + $0xb0] sm:$0xff]
    %v562 = vld [vmem:[#allocation7 + $0xb8] sm:$0xff]
    %v563 = vld [vmem:[#allocation7 + $0xc0] sm:$0xff]
    %v564 = vld [vmem:[#allocation7 + $0xc8] sm:$0xff]
    %v565 = vld [vmem:[#allocation7 + $0xd0] sm:$0xff]
    %v566 = vld [vmem:[#allocation7 + $0xd8] sm:$0xff]
    %v567 = vld [vmem:[#allocation7 + $0xe0] sm:$0xff]
    %v568 = vld [vmem:[#allocation7 + $0xe8] sm:$0xff]
    %v569 = vld [vmem:[#allocation7 + $0xf0] sm:$0xff]
    %v570 = vld [vmem:[#allocation7 + $0xf8] sm:$0xff]
    %v571 = vld [vmem:[#allocation7 + $0x100] sm:$0xff]
    %v572 = vld [vmem:[#allocation7 + $0x108] sm:$0xff]
    %v573 = vld [vmem:[#allocation7 + $0x110] sm:$0xff]
    %v574 = vld [vmem:[#allocation7 + $0x118] sm:$0xff]
    %v575 = vld [vmem:[#allocation7 + $0x120] sm:$0xff]
    %v576 = vld [vmem:[#allocation7 + $0x128] sm:$0xff]
    %v577 = vld [vmem:[#allocation7 + $0x130] sm:$0xff]
    %v578 = vld [vmem:[#allocation7 + $0x138] sm:$0xff]
    %v579 = vld [vmem:[#allocation7 + $0x140] sm:$0xff]
    %v580 = vld [vmem:[#allocation7 + $0x148] sm:$0xff]
    %v581 = vld [vmem:[#allocation7 + $0x150] sm:$0xff]
    %v582 = vld [vmem:[#allocation7 + $0x158] sm:$0xff]
    %v583 = vld [vmem:[#allocation7 + $0x160] sm:$0xff]
    %v584 = vld [vmem:[#allocation7 + $0x168] sm:$0xff]
    %v585 = vld [vmem:[#allocation7 + $0x170] sm:$0xff]
    %v586 = vld [vmem:[#allocation7 + $0x178] sm:$0xff]
    %v587 = vld [vmem:[#allocation7 + $0x180] sm:$0xff]
    %v588 = vld [vmem:[#allocation7 + $0x188] sm:$0xff]
    %v589 = vld [vmem:[#allocation7 + $0x190] sm:$0xff]
    %v590 = vld [vmem:[#allocation7 + $0x198] sm:$0xff]
    %v591 = vld [vmem:[#allocation7 + $0x1a0] sm:$0xff]
    %v592 = vld [vmem:[#allocation7 + $0x1a8] sm:$0xff]
    %v593 = vld [vmem:[#allocation7 + $0x1b0] sm:$0xff]
    %v594 = vld [vmem:[#allocation7 + $0x1b8] sm:$0xff]
    %v595 = vld [vmem:[#allocation7 + $0x1c0] sm:$0xff]
    %v596 = vld [vmem:[#allocation7 + $0x1c8] sm:$0xff]
    %v597 = vld [vmem:[#allocation7 + $0x1d0] sm:$0xff]
    %v598 = vld [vmem:[#allocation7 + $0x1d8] sm:$0xff]
    %v599 = vld [vmem:[#allocation7 + $0x1e0] sm:$0xff]
    %v600 = vld [vmem:[#allocation7 + $0x1e8] sm:$0xff]
    %v601 = vld [vmem:[#allocation7 + $0x1f0] sm:$0xff]
    %v602 = vld [vmem:[#allocation7 + $0x1f8] sm:$0xff]
    %v603 = vld [vmem:[#allocation7 + $0x200] sm:$0xff]
    %v604 = vld [vmem:[#allocation7 + $0x208] sm:$0xff]
    %v605 = vld [vmem:[#allocation7 + $0x210] sm:$0xff]
    %v606 = vld [vmem:[#allocation7 + $0x218] sm:$0xff]
    %v607 = vld [vmem:[#allocation7 + $0x220] sm:$0xff]
    %v608 = vld [vmem:[#allocation7 + $0x228] sm:$0xff]
    %v609 = vld [vmem:[#allocation7 + $0x230] sm:$0xff]
    %v610 = vld [vmem:[#allocation7 + $0x238] sm:$0xff]
    %v611 = vld [vmem:[#allocation7 + $0x240] sm:$0xff]
    %v612 = vld [vmem:[#allocation7 + $0x248] sm:$0xff]
    %v613 = vld [vmem:[#allocation7 + $0x250] sm:$0xff]
    %v614 = vld [vmem:[#allocation7 + $0x258] sm:$0xff]
    %v615 = vld [vmem:[#allocation7 + $0x260] sm:$0xff]
    %v616 = vld [vmem:[#allocation7 + $0x268] sm:$0xff]
    %v617 = vld [vmem:[#allocation7 + $0x270] sm:$0xff]
    %v618 = vld [vmem:[#allocation7 + $0x278] sm:$0xff]
    %v619 = vld [vmem:[#allocation7 + $0x280] sm:$0xff]
    %v620 = vld [vmem:[#allocation7 + $0x288] sm:$0xff]
    %v621 = vld [vmem:[#allocation7 + $0x290] sm:$0xff]
    %v622 = vld [vmem:[#allocation7 + $0x298] sm:$0xff]
    %v623 = vld [vmem:[#allocation7 + $0x2a0] sm:$0xff]
    %v624 = vld [vmem:[#allocation7 + $0x2a8] sm:$0xff]
    %v625 = vld [vmem:[#allocation7 + $0x2b0] sm:$0xff]
    %v626 = vld [vmem:[#allocation7 + $0x2b8] sm:$0xff]
    %v627 = vld [vmem:[#allocation7 + $0x2c0] sm:$0xff]
    %v628 = vld [vmem:[#allocation7 + $0x2c8] sm:$0xff]
    %v629 = vld [vmem:[#allocation7 + $0x2d0] sm:$0xff]
    %v630 = vld [vmem:[#allocation7 + $0x2d8] sm:$0xff]
    %v631 = vld [vmem:[#allocation7 + $0x2e0] sm:$0xff]
    %v632 = vld [vmem:[#allocation7 + $0x2e8] sm:$0xff]
    %v633 = vld [vmem:[#allocation7 + $0x2f0] sm:$0xff]
    %v634 = vld [vmem:[#allocation7 + $0x2f8] sm:$0xff]
    %v635 = vld [vmem:[#allocation7 + $0x300] sm:$0xff]
    %v636 = vld [vmem:[#allocation7 + $0x308] sm:$0xff]
    %v637 = vld [vmem:[#allocation7 + $0x310] sm:$0xff]
    %v638 = vld [vmem:[#allocation7 + $0x318] sm:$0xff]
    %v639 = vld [vmem:[#allocation7 + $0x320] sm:$0xff]
    %v640 = vld [vmem:[#allocation7 + $0x328] sm:$0xff]
    %v641 = vld [vmem:[#allocation7 + $0x330] sm:$0xff]
    %v642 = vld [vmem:[#allocation7 + $0x338] sm:$0xff]
    %v643 = vld [vmem:[#allocation7 + $0x340] sm:$0xff]
    %v644 = vld [vmem:[#allocation7 + $0x348] sm:$0xff]
    %v645 = vld [vmem:[#allocation7 + $0x350] sm:$0xff]
    %v646 = vld [vmem:[#allocation7 + $0x358] sm:$0xff]
    %v647 = vld [vmem:[#allocation7 + $0x360] sm:$0xff]
    %v648 = vld [vmem:[#allocation7 + $0x368] sm:$0xff]
    %v649 = vld [vmem:[#allocation7 + $0x370] sm:$0xff]
    %v650 = vld [vmem:[#allocation7 + $0x378] sm:$0xff]
    %v651 = vld [vmem:[#allocation7 + $0x380] sm:$0xff]
    %v652 = vld [vmem:[#allocation7 + $0x388] sm:$0xff]
    %v653 = vld [vmem:[#allocation7 + $0x390] sm:$0xff]
    %v654 = vld [vmem:[#allocation7 + $0x398] sm:$0xff]
    %v655 = vld [vmem:[#allocation7 + $0x3a0] sm:$0xff]
    %v656 = vld [vmem:[#allocation7 + $0x3a8] sm:$0xff]
    %v657 = vld [vmem:[#allocation7 + $0x3b0] sm:$0xff]
    %v658 = vld [vmem:[#allocation7 + $0x3b8] sm:$0xff]
    %v659 = vld [vmem:[#allocation7 + $0x3c0] sm:$0xff]
    %v660 = vld [vmem:[#allocation7 + $0x3c8] sm:$0xff]
    %v661 = vld [vmem:[#allocation7 + $0x3d0] sm:$0xff]
    %v662 = vld [vmem:[#allocation7 + $0x3d8] sm:$0xff]
    %v663 = vld [vmem:[#allocation7 + $0x3e0] sm:$0xff]
    %v664 = vld [vmem:[#allocation7 + $0x3e8] sm:$0xff]
    %v665 = vld [vmem:[#allocation7 + $0x3f0] sm:$0xff]
    %v666 = vld [vmem:[#allocation7 + $0x3f8] sm:$0xff]
    %v667 = vld [vmem:[%s6] sm:$0xf]
    %v669 = vlaneseq
    %v670 = vshrl.u32 %v669, 7
    %v671 = vsub.s32 0, %v670
    %v672 = vrot.slane %v667, %v671
    %v673 = vlaneseq
    %v674 = vshrl.u32 %v673, 7
    %v675 = vsub.s32 1, %v674
    %v676 = vrot.slane %v667, %v675
    %v677 = vlaneseq
    %v678 = vshrl.u32 %v677, 7
    %v679 = vsub.s32 2, %v678
    %v680 = vrot.slane %v667, %v679
    %v681 = vlaneseq
    %v682 = vshrl.u32 %v681, 7
    %v683 = vsub.s32 3, %v682
    %v684 = vrot.slane %v667, %v683
    %v817 = vunpack.c.l.b16 %v539
    %v818 = vunpack.c.h.b16 %v539
    %v819 = vunpack.c.l.b16 %v540
    %v820 = vunpack.c.h.b16 %v540
    %v821 = vunpack.c.l.b16 %v541
    %v822 = vunpack.c.h.b16 %v541
    %v823 = vunpack.c.l.b16 %v542
    %v824 = vunpack.c.h.b16 %v542
    %v825 = vunpack.c.l.b16 %v543
    %v826 = vunpack.c.h.b16 %v543
    %v827 = vunpack.c.l.b16 %v544
    %v828 = vunpack.c.h.b16 %v544
    %v829 = vunpack.c.l.b16 %v545
    %v830 = vunpack.c.h.b16 %v545
    %v831 = vunpack.c.l.b16 %v546
    %v832 = vunpack.c.h.b16 %v546
    %v833 = vunpack.c.l.b16 %v547
    %v834 = vunpack.c.h.b16 %v547
    %v835 = vunpack.c.l.b16 %v548
    %v836 = vunpack.c.h.b16 %v548
    %v837 = vunpack.c.l.b16 %v549
    %v838 = vunpack.c.h.b16 %v549
    %v839 = vunpack.c.l.b16 %v550
    %v840 = vunpack.c.h.b16 %v550
    %v841 = vunpack.c.l.b16 %v551
    %v842 = vunpack.c.h.b16 %v551
    %v843 = vunpack.c.l.b16 %v552
    %v844 = vunpack.c.h.b16 %v552
    %v845 = vunpack.c.l.b16 %v553
    %v846 = vunpack.c.h.b16 %v553
    %v847 = vunpack.c.l.b16 %v554
    %v848 = vunpack.c.h.b16 %v554
    %v849 = vunpack.c.l.b16 %v555
    %v850 = vunpack.c.h.b16 %v555
    %v851 = vunpack.c.l.b16 %v556
    %v852 = vunpack.c.h.b16 %v556
    %v853 = vunpack.c.l.b16 %v557
    %v854 = vunpack.c.h.b16 %v557
    %v855 = vunpack.c.l.b16 %v558
    %v856 = vunpack.c.h.b16 %v558
    %v857 = vunpack.c.l.b16 %v559
    %v858 = vunpack.c.h.b16 %v559
    %v859 = vunpack.c.l.b16 %v560
    %v860 = vunpack.c.h.b16 %v560
    %v861 = vunpack.c.l.b16 %v561
    %v862 = vunpack.c.h.b16 %v561
    %v863 = vunpack.c.l.b16 %v562
    %v864 = vunpack.c.h.b16 %v562
    %v865 = vunpack.c.l.b16 %v563
    %v866 = vunpack.c.h.b16 %v563
    %v867 = vunpack.c.l.b16 %v564
    %v868 = vunpack.c.h.b16 %v564
    %v869 = vunpack.c.l.b16 %v565
    %v870 = vunpack.c.h.b16 %v565
    %v871 = vunpack.c.l.b16 %v566
    %v872 = vunpack.c.h.b16 %v566
    %v873 = vunpack.c.l.b16 %v567
    %v874 = vunpack.c.h.b16 %v567
    %v875 = vunpack.c.l.b16 %v568
    %v876 = vunpack.c.h.b16 %v568
    %v877 = vunpack.c.l.b16 %v569
    %v878 = vunpack.c.h.b16 %v569
    %v879 = vunpack.c.l.b16 %v570
    %v880 = vunpack.c.h.b16 %v570
    %v881 = vunpack.c.l.b16 %v571
    %v882 = vunpack.c.h.b16 %v571
    %v883 = vunpack.c.l.b16 %v572
    %v884 = vunpack.c.h.b16 %v572
    %v885 = vunpack.c.l.b16 %v573
    %v886 = vunpack.c.h.b16 %v573
    %v887 = vunpack.c.l.b16 %v574
    %v888 = vunpack.c.h.b16 %v574
    %v889 = vunpack.c.l.b16 %v575
    %v890 = vunpack.c.h.b16 %v575
    %v891 = vunpack.c.l.b16 %v576
    %v892 = vunpack.c.h.b16 %v576
    %v893 = vunpack.c.l.b16 %v577
    %v894 = vunpack.c.h.b16 %v577
    %v895 = vunpack.c.l.b16 %v578
    %v896 = vunpack.c.h.b16 %v578
    %v897 = vunpack.c.l.b16 %v579
    %v898 = vunpack.c.h.b16 %v579
    %v899 = vunpack.c.l.b16 %v580
    %v900 = vunpack.c.h.b16 %v580
    %v901 = vunpack.c.l.b16 %v581
    %v902 = vunpack.c.h.b16 %v581
    %v903 = vunpack.c.l.b16 %v582
    %v904 = vunpack.c.h.b16 %v582
    %v905 = vunpack.c.l.b16 %v583
    %v906 = vunpack.c.h.b16 %v583
    %v907 = vunpack.c.l.b16 %v584
    %v908 = vunpack.c.h.b16 %v584
    %v909 = vunpack.c.l.b16 %v585
    %v910 = vunpack.c.h.b16 %v585
    %v911 = vunpack.c.l.b16 %v586
    %v912 = vunpack.c.h.b16 %v586
    %v913 = vunpack.c.l.b16 %v587
    %v914 = vunpack.c.h.b16 %v587
    %v915 = vunpack.c.l.b16 %v588
    %v916 = vunpack.c.h.b16 %v588
    %v917 = vunpack.c.l.b16 %v589
    %v918 = vunpack.c.h.b16 %v589
    %v919 = vunpack.c.l.b16 %v590
    %v920 = vunpack.c.h.b16 %v590
    %v921 = vunpack.c.l.b16 %v591
    %v922 = vunpack.c.h.b16 %v591
    %v923 = vunpack.c.l.b16 %v592
    %v924 = vunpack.c.h.b16 %v592
    %v925 = vunpack.c.l.b16 %v593
    %v926 = vunpack.c.h.b16 %v593
    %v927 = vunpack.c.l.b16 %v594
    %v928 = vunpack.c.h.b16 %v594
    %v929 = vunpack.c.l.b16 %v595
    %v930 = vunpack.c.h.b16 %v595
    %v931 = vunpack.c.l.b16 %v596
    %v932 = vunpack.c.h.b16 %v596
    %v933 = vunpack.c.l.b16 %v597
    %v934 = vunpack.c.h.b16 %v597
    %v935 = vunpack.c.l.b16 %v598
    %v936 = vunpack.c.h.b16 %v598
    %v937 = vunpack.c.l.b16 %v599
    %v938 = vunpack.c.h.b16 %v599
    %v939 = vunpack.c.l.b16 %v600
    %v940 = vunpack.c.h.b16 %v600
    %v941 = vunpack.c.l.b16 %v601
    %v942 = vunpack.c.h.b16 %v601
    %v943 = vunpack.c.l.b16 %v602
    %v944 = vunpack.c.h.b16 %v602
    %v945 = vunpack.c.l.b16 %v603
    %v946 = vunpack.c.h.b16 %v603
    %v947 = vunpack.c.l.b16 %v604
    %v948 = vunpack.c.h.b16 %v604
    %v949 = vunpack.c.l.b16 %v605
    %v950 = vunpack.c.h.b16 %v605
    %v951 = vunpack.c.l.b16 %v606
    %v952 = vunpack.c.h.b16 %v606
    %v953 = vunpack.c.l.b16 %v607
    %v954 = vunpack.c.h.b16 %v607
    %v955 = vunpack.c.l.b16 %v608
    %v956 = vunpack.c.h.b16 %v608
    %v957 = vunpack.c.l.b16 %v609
    %v958 = vunpack.c.h.b16 %v609
    %v959 = vunpack.c.l.b16 %v610
    %v960 = vunpack.c.h.b16 %v610
    %v961 = vunpack.c.l.b16 %v611
    %v962 = vunpack.c.h.b16 %v611
    %v963 = vunpack.c.l.b16 %v612
    %v964 = vunpack.c.h.b16 %v612
    %v965 = vunpack.c.l.b16 %v613
    %v966 = vunpack.c.h.b16 %v613
    %v967 = vunpack.c.l.b16 %v614
    %v968 = vunpack.c.h.b16 %v614
    %v969 = vunpack.c.l.b16 %v615
    %v970 = vunpack.c.h.b16 %v615
    %v971 = vunpack.c.l.b16 %v616
    %v972 = vunpack.c.h.b16 %v616
    %v973 = vunpack.c.l.b16 %v617
    %v974 = vunpack.c.h.b16 %v617
    %v975 = vunpack.c.l.b16 %v618
    %v976 = vunpack.c.h.b16 %v618
    %v977 = vunpack.c.l.b16 %v619
    %v978 = vunpack.c.h.b16 %v619
    %v979 = vunpack.c.l.b16 %v620
    %v980 = vunpack.c.h.b16 %v620
    %v981 = vunpack.c.l.b16 %v621
    %v982 = vunpack.c.h.b16 %v621
    %v983 = vunpack.c.l.b16 %v622
    %v984 = vunpack.c.h.b16 %v622
    %v985 = vunpack.c.l.b16 %v623
    %v986 = vunpack.c.h.b16 %v623
    %v987 = vunpack.c.l.b16 %v624
    %v988 = vunpack.c.h.b16 %v624
    %v989 = vunpack.c.l.b16 %v625
    %v990 = vunpack.c.h.b16 %v625
    %v991 = vunpack.c.l.b16 %v626
    %v992 = vunpack.c.h.b16 %v626
    %v993 = vunpack.c.l.b16 %v627
    %v994 = vunpack.c.h.b16 %v627
    %v995 = vunpack.c.l.b16 %v628
    %v996 = vunpack.c.h.b16 %v628
    %v997 = vunpack.c.l.b16 %v629
    %v998 = vunpack.c.h.b16 %v629
    %v999 = vunpack.c.l.b16 %v630
    %v1000 = vunpack.c.h.b16 %v630
    %v1001 = vunpack.c.l.b16 %v631
    %v1002 = vunpack.c.h.b16 %v631
    %v1003 = vunpack.c.l.b16 %v632
    %v1004 = vunpack.c.h.b16 %v632
    %v1005 = vunpack.c.l.b16 %v633
    %v1006 = vunpack.c.h.b16 %v633
    %v1007 = vunpack.c.l.b16 %v634
    %v1008 = vunpack.c.h.b16 %v634
    %v1009 = vunpack.c.l.b16 %v635
    %v1010 = vunpack.c.h.b16 %v635
    %v1011 = vunpack.c.l.b16 %v636
    %v1012 = vunpack.c.h.b16 %v636
    %v1013 = vunpack.c.l.b16 %v637
    %v1014 = vunpack.c.h.b16 %v637
    %v1015 = vunpack.c.l.b16 %v638
    %v1016 = vunpack.c.h.b16 %v638
    %v1017 = vunpack.c.l.b16 %v639
    %v1018 = vunpack.c.h.b16 %v639
    %v1019 = vunpack.c.l.b16 %v640
    %v1020 = vunpack.c.h.b16 %v640
    %v1021 = vunpack.c.l.b16 %v641
    %v1022 = vunpack.c.h.b16 %v641
    %v1023 = vunpack.c.l.b16 %v642
    %v1024 = vunpack.c.h.b16 %v642
    %v1025 = vunpack.c.l.b16 %v643
    %v1026 = vunpack.c.h.b16 %v643
    %v1027 = vunpack.c.l.b16 %v644
    %v1028 = vunpack.c.h.b16 %v644
    %v1029 = vunpack.c.l.b16 %v645
    %v1030 = vunpack.c.h.b16 %v645
    %v1031 = vunpack.c.l.b16 %v646
    %v1032 = vunpack.c.h.b16 %v646
    %v1033 = vunpack.c.l.b16 %v647
    %v1034 = vunpack.c.h.b16 %v647
    %v1035 = vunpack.c.l.b16 %v648
    %v1036 = vunpack.c.h.b16 %v648
    %v1037 = vunpack.c.l.b16 %v649
    %v1038 = vunpack.c.h.b16 %v649
    %v1039 = vunpack.c.l.b16 %v650
    %v1040 = vunpack.c.h.b16 %v650
    %v1041 = vunpack.c.l.b16 %v651
    %v1042 = vunpack.c.h.b16 %v651
    %v1043 = vunpack.c.l.b16 %v652
    %v1044 = vunpack.c.h.b16 %v652
    %v1045 = vunpack.c.l.b16 %v653
    %v1046 = vunpack.c.h.b16 %v653
    %v1047 = vunpack.c.l.b16 %v654
    %v1048 = vunpack.c.h.b16 %v654
    %v1049 = vunpack.c.l.b16 %v655
    %v1050 = vunpack.c.h.b16 %v655
    %v1051 = vunpack.c.l.b16 %v656
    %v1052 = vunpack.c.h.b16 %v656
    %v1053 = vunpack.c.l.b16 %v657
    %v1054 = vunpack.c.h.b16 %v657
    %v1055 = vunpack.c.l.b16 %v658
    %v1056 = vunpack.c.h.b16 %v658
    %v1057 = vunpack.c.l.b16 %v659
    %v1058 = vunpack.c.h.b16 %v659
    %v1059 = vunpack.c.l.b16 %v660
    %v1060 = vunpack.c.h.b16 %v660
    %v1061 = vunpack.c.l.b16 %v661
    %v1062 = vunpack.c.h.b16 %v661
    %v1063 = vunpack.c.l.b16 %v662
    %v1064 = vunpack.c.h.b16 %v662
    %v1065 = vunpack.c.l.b16 %v663
    %v1066 = vunpack.c.h.b16 %v663
    %v1067 = vunpack.c.l.b16 %v664
    %v1068 = vunpack.c.h.b16 %v664
    %v1069 = vunpack.c.l.b16 %v665
    %v1070 = vunpack.c.h.b16 %v665
    %v1071 = vunpack.c.l.b16 %v666
    %v1072 = vunpack.c.h.b16 %v666
    %v1073 = vpack.c.b16 %v821, %v817
    %v1074 = vpack.c.b16 %v822, %v818
    %v1075 = vpack.c.b16 %v823, %v819
    %v1076 = vpack.c.b16 %v824, %v820
    %v1077 = vpack.c.b16 %v829, %v825
    %v1078 = vpack.c.b16 %v830, %v826
    %v1079 = vpack.c.b16 %v831, %v827
    %v1080 = vpack.c.b16 %v832, %v828
    %v1081 = vpack.c.b16 %v837, %v833
    %v1082 = vpack.c.b16 %v838, %v834
    %v1083 = vpack.c.b16 %v839, %v835
    %v1084 = vpack.c.b16 %v840, %v836
    %v1085 = vpack.c.b16 %v845, %v841
    %v1086 = vpack.c.b16 %v846, %v842
    %v1087 = vpack.c.b16 %v847, %v843
    %v1088 = vpack.c.b16 %v848, %v844
    %v1089 = vpack.c.b16 %v853, %v849
    %v1090 = vpack.c.b16 %v854, %v850
    %v1091 = vpack.c.b16 %v855, %v851
    %v1092 = vpack.c.b16 %v856, %v852
    %v1093 = vpack.c.b16 %v861, %v857
    %v1094 = vpack.c.b16 %v862, %v858
    %v1095 = vpack.c.b16 %v863, %v859
    %v1096 = vpack.c.b16 %v864, %v860
    %v1097 = vpack.c.b16 %v869, %v865
    %v1098 = vpack.c.b16 %v870, %v866
    %v1099 = vpack.c.b16 %v871, %v867
    %v1100 = vpack.c.b16 %v872, %v868
    %v1101 = vpack.c.b16 %v877, %v873
    %v1102 = vpack.c.b16 %v878, %v874
    %v1103 = vpack.c.b16 %v879, %v875
    %v1104 = vpack.c.b16 %v880, %v876
    %v1105 = vpack.c.b16 %v885, %v881
    %v1106 = vpack.c.b16 %v886, %v882
    %v1107 = vpack.c.b16 %v887, %v883
    %v1108 = vpack.c.b16 %v888, %v884
    %v1109 = vpack.c.b16 %v893, %v889
    %v1110 = vpack.c.b16 %v894, %v890
    %v1111 = vpack.c.b16 %v895, %v891
    %v1112 = vpack.c.b16 %v896, %v892
    %v1113 = vpack.c.b16 %v901, %v897
    %v1114 = vpack.c.b16 %v902, %v898
    %v1115 = vpack.c.b16 %v903, %v899
    %v1116 = vpack.c.b16 %v904, %v900
    %v1117 = vpack.c.b16 %v909, %v905
    %v1118 = vpack.c.b16 %v910, %v906
    %v1119 = vpack.c.b16 %v911, %v907
    %v1120 = vpack.c.b16 %v912, %v908
    %v1121 = vpack.c.b16 %v917, %v913
    %v1122 = vpack.c.b16 %v918, %v914
    %v1123 = vpack.c.b16 %v919, %v915
    %v1124 = vpack.c.b16 %v920, %v916
    %v1125 = vpack.c.b16 %v925, %v921
    %v1126 = vpack.c.b16 %v926, %v922
    %v1127 = vpack.c.b16 %v927, %v923
    %v1128 = vpack.c.b16 %v928, %v924
    %v1129 = vpack.c.b16 %v933, %v929
    %v1130 = vpack.c.b16 %v934, %v930
    %v1131 = vpack.c.b16 %v935, %v931
    %v1132 = vpack.c.b16 %v936, %v932
    %v1133 = vpack.c.b16 %v941, %v937
    %v1134 = vpack.c.b16 %v942, %v938
    %v1135 = vpack.c.b16 %v943, %v939
    %v1136 = vpack.c.b16 %v944, %v940
    %v1137 = vpack.c.b16 %v949, %v945
    %v1138 = vpack.c.b16 %v950, %v946
    %v1139 = vpack.c.b16 %v951, %v947
    %v1140 = vpack.c.b16 %v952, %v948
    %v1141 = vpack.c.b16 %v957, %v953
    %v1142 = vpack.c.b16 %v958, %v954
    %v1143 = vpack.c.b16 %v959, %v955
    %v1144 = vpack.c.b16 %v960, %v956
    %v1145 = vpack.c.b16 %v965, %v961
    %v1146 = vpack.c.b16 %v966, %v962
    %v1147 = vpack.c.b16 %v967, %v963
    %v1148 = vpack.c.b16 %v968, %v964
    %v1149 = vpack.c.b16 %v973, %v969
    %v1150 = vpack.c.b16 %v974, %v970
    %v1151 = vpack.c.b16 %v975, %v971
    %v1152 = vpack.c.b16 %v976, %v972
    %v1153 = vpack.c.b16 %v981, %v977
    %v1154 = vpack.c.b16 %v982, %v978
    %v1155 = vpack.c.b16 %v983, %v979
    %v1156 = vpack.c.b16 %v984, %v980
    %v1157 = vpack.c.b16 %v989, %v985
    %v1158 = vpack.c.b16 %v990, %v986
    %v1159 = vpack.c.b16 %v991, %v987
    %v1160 = vpack.c.b16 %v992, %v988
    %v1161 = vpack.c.b16 %v997, %v993
    %v1162 = vpack.c.b16 %v998, %v994
    %v1163 = vpack.c.b16 %v999, %v995
    %v1164 = vpack.c.b16 %v1000, %v996
    %v1165 = vpack.c.b16 %v1005, %v1001
    %v1166 = vpack.c.b16 %v1006, %v1002
    %v1167 = vpack.c.b16 %v1007, %v1003
    %v1168 = vpack.c.b16 %v1008, %v1004
    %v1169 = vpack.c.b16 %v1013, %v1009
    %v1170 = vpack.c.b16 %v1014, %v1010
    %v1171 = vpack.c.b16 %v1015, %v1011
    %v1172 = vpack.c.b16 %v1016, %v1012
    %v1173 = vpack.c.b16 %v1021, %v1017
    %v1174 = vpack.c.b16 %v1022, %v1018
    %v1175 = vpack.c.b16 %v1023, %v1019
    %v1176 = vpack.c.b16 %v1024, %v1020
    %v1177 = vpack.c.b16 %v1029, %v1025
    %v1178 = vpack.c.b16 %v1030, %v1026
    %v1179 = vpack.c.b16 %v1031, %v1027
    %v1180 = vpack.c.b16 %v1032, %v1028
    %v1181 = vpack.c.b16 %v1037, %v1033
    %v1182 = vpack.c.b16 %v1038, %v1034
    %v1183 = vpack.c.b16 %v1039, %v1035
    %v1184 = vpack.c.b16 %v1040, %v1036
    %v1185 = vpack.c.b16 %v1045, %v1041
    %v1186 = vpack.c.b16 %v1046, %v1042
    %v1187 = vpack.c.b16 %v1047, %v1043
    %v1188 = vpack.c.b16 %v1048, %v1044
    %v1189 = vpack.c.b16 %v1053, %v1049
    %v1190 = vpack.c.b16 %v1054, %v1050
    %v1191 = vpack.c.b16 %v1055, %v1051
    %v1192 = vpack.c.b16 %v1056, %v1052
    %v1193 = vpack.c.b16 %v1061, %v1057
    %v1194 = vpack.c.b16 %v1062, %v1058
    %v1195 = vpack.c.b16 %v1063, %v1059
    %v1196 = vpack.c.b16 %v1064, %v1060
    %v1197 = vpack.c.b16 %v1069, %v1065
    %v1198 = vpack.c.b16 %v1070, %v1066
    %v1199 = vpack.c.b16 %v1071, %v1067
    %v1200 = vpack.c.b16 %v1072, %v1068
    %1329 = vmatprep.subr.bf16.mxu0 %v1074
    %1330 = vmatpush1.bf16.msra.mxu0 %v1073
    %1331 = vmatprep.subr.bf16.mxu0 %v1078
    %1332 = vmatpush1.bf16.msra.mxu0 %v1077
    %1333 = vmatprep.subr.bf16.mxu0 %v1082
    %1334 = vmatpush1.bf16.msra.mxu0 %v1081
    %1335 = vmatprep.subr.bf16.mxu0 %v1086
    %1336 = vmatpush1.bf16.msra.mxu0 %v1085
    %1337 = vmatprep.subr.bf16.mxu0 %v1090
    %1338 = vmatpush1.bf16.msra.mxu0 %v1089
    %1339 = vmatprep.subr.bf16.mxu0 %v1094
    %1340 = vmatpush1.bf16.msra.mxu0 %v1093
    %1341 = vmatprep.subr.bf16.mxu0 %v1098
    %1342 = vmatpush1.bf16.msra.mxu0 %v1097
    %1343 = vmatprep.subr.bf16.mxu0 %v1102
    %1344 = vmatpush1.bf16.msra.mxu0 %v1101
    %1345 = vmatprep.subr.bf16.mxu0 %v1106
    %1346 = vmatpush1.bf16.msra.mxu0 %v1105
    %1347 = vmatprep.subr.bf16.mxu0 %v1110
    %1348 = vmatpush1.bf16.msra.mxu0 %v1109
    %1349 = vmatprep.subr.bf16.mxu0 %v1114
    %1350 = vmatpush1.bf16.msra.mxu0 %v1113
    %1351 = vmatprep.subr.bf16.mxu0 %v1118
    %1352 = vmatpush1.bf16.msra.mxu0 %v1117
    %1353 = vmatprep.subr.bf16.mxu0 %v1122
    %1354 = vmatpush1.bf16.msra.mxu0 %v1121
    %1355 = vmatprep.subr.bf16.mxu0 %v1126
    %1356 = vmatpush1.bf16.msra.mxu0 %v1125
    %1357 = vmatprep.subr.bf16.mxu0 %v1130
    %1358 = vmatpush1.bf16.msra.mxu0 %v1129
    %1359 = vmatprep.subr.bf16.mxu0 %v1134
    %1360 = vmatpush1.bf16.msra.mxu0 %v1133
    %1361 = vmatprep.mubr.bf16.mxu0 %v536
    %1362 = vmatmul.mubr.bf16.gmra.mrb[0].mxu0 %v535
    %v1363 = vpop.f32.mrb[0].mxu0
    %v1364 = vadd.f32 %v672, %v1363
    %v1365 = vpop.f32.mrb[0].mxu0
    %v1366 = vadd.f32 %v676, %v1365
    %v1367 = vpop.f32.mrb[0].mxu0
    %v1368 = vadd.f32 %v672, %v1367
    %v1369 = vpop.f32.mrb[0].mxu0
    %v1370 = vadd.f32 %v676, %v1369
    %1371 = vdwg.mxu0
    %1372 = vmatprep.subr.bf16.mxu0 %v1138
    %1373 = vmatpush1.bf16.msra.mxu0 %v1137
    %1374 = vmatprep.subr.bf16.mxu0 %v1142
    %1375 = vmatpush1.bf16.msra.mxu0 %v1141
    %1376 = vmatprep.subr.bf16.mxu0 %v1146
    %1377 = vmatpush1.bf16.msra.mxu0 %v1145
    %1378 = vmatprep.subr.bf16.mxu0 %v1150
    %1379 = vmatpush1.bf16.msra.mxu0 %v1149
    %1380 = vmatprep.subr.bf16.mxu0 %v1154
    %1381 = vmatpush1.bf16.msra.mxu0 %v1153
    %1382 = vmatprep.subr.bf16.mxu0 %v1158
    %1383 = vmatpush1.bf16.msra.mxu0 %v1157
    %1384 = vmatprep.subr.bf16.mxu0 %v1162
    %1385 = vmatpush1.bf16.msra.mxu0 %v1161
    %1386 = vmatprep.subr.bf16.mxu0 %v1166
    %1387 = vmatpush1.bf16.msra.mxu0 %v1165
    %1388 = vmatprep.subr.bf16.mxu0 %v1170
    %1389 = vmatpush1.bf16.msra.mxu0 %v1169
    %1390 = vmatprep.subr.bf16.mxu0 %v1174
    %1391 = vmatpush1.bf16.msra.mxu0 %v1173
    %1392 = vmatprep.subr.bf16.mxu0 %v1178
    %1393 = vmatpush1.bf16.msra.mxu0 %v1177
    %1394 = vmatprep.subr.bf16.mxu0 %v1182
    %1395 = vmatpush1.bf16.msra.mxu0 %v1181
    %1396 = vmatprep.subr.bf16.mxu0 %v1186
    %1397 = vmatpush1.bf16.msra.mxu0 %v1185
    %1398 = vmatprep.subr.bf16.mxu0 %v1190
    %1399 = vmatpush1.bf16.msra.mxu0 %v1189
    %1400 = vmatprep.subr.bf16.mxu0 %v1194
    %1401 = vmatpush1.bf16.msra.mxu0 %v1193
    %1402 = vmatprep.subr.bf16.mxu0 %v1198
    %1403 = vmatpush1.bf16.msra.mxu0 %v1197
    %1404 = vmatprep.mubr.bf16.mxu0 %v538
    %1405 = vmatmul.mubr.bf16.gmra.mrb[0].mxu0 %v537
    %v1406 = vpop.f32.mrb[0].mxu0
    %v1407 = vadd.f32 %v1364, %v1406
    %v1408 = vpop.f32.mrb[0].mxu0
    %v1409 = vadd.f32 %v1366, %v1408
    %v1410 = vpop.f32.mrb[0].mxu0
    %v1411 = vadd.f32 %v1368, %v1410
    %v1412 = vpop.f32.mrb[0].mxu0
    %v1413 = vadd.f32 %v1370, %v1412
    %1414 = vdwg.mxu0
    %1415 = vmatprep.subr.bf16.mxu0 %v1076
    %1416 = vmatpush1.bf16.msra.mxu0 %v1075
    %1417 = vmatprep.subr.bf16.mxu0 %v1080
    %1418 = vmatpush1.bf16.msra.mxu0 %v1079
    %1419 = vmatprep.subr.bf16.mxu0 %v1084
    %1420 = vmatpush1.bf16.msra.mxu0 %v1083
    %1421 = vmatprep.subr.bf16.mxu0 %v1088
    %1422 = vmatpush1.bf16.msra.mxu0 %v1087
    %1423 = vmatprep.subr.bf16.mxu0 %v1092
    %1424 = vmatpush1.bf16.msra.mxu0 %v1091
    %1425 = vmatprep.subr.bf16.mxu0 %v1096
    %1426 = vmatpush1.bf16.msra.mxu0 %v1095
    %1427 = vmatprep.subr.bf16.mxu0 %v1100
    %1428 = vmatpush1.bf16.msra.mxu0 %v1099
    %1429 = vmatprep.subr.bf16.mxu0 %v1104
    %1430 = vmatpush1.bf16.msra.mxu0 %v1103
    %1431 = vmatprep.subr.bf16.mxu0 %v1108
    %1432 = vmatpush1.bf16.msra.mxu0 %v1107
    %1433 = vmatprep.subr.bf16.mxu0 %v1112
    %1434 = vmatpush1.bf16.msra.mxu0 %v1111
    %1435 = vmatprep.subr.bf16.mxu0 %v1116
    %1436 = vmatpush1.bf16.msra.mxu0 %v1115
    %1437 = vmatprep.subr.bf16.mxu0 %v1120
    %1438 = vmatpush1.bf16.msra.mxu0 %v1119
    %1439 = vmatprep.subr.bf16.mxu0 %v1124
    %1440 = vmatpush1.bf16.msra.mxu0 %v1123
    %1441 = vmatprep.subr.bf16.mxu0 %v1128
    %1442 = vmatpush1.bf16.msra.mxu0 %v1127
    %1443 = vmatprep.subr.bf16.mxu0 %v1132
    %1444 = vmatpush1.bf16.msra.mxu0 %v1131
    %1445 = vmatprep.subr.bf16.mxu0 %v1136
    %1446 = vmatpush1.bf16.msra.mxu0 %v1135
    %1447 = vmatprep.mubr.bf16.mxu0 %v536
    %1448 = vmatmul.mubr.bf16.gmra.mrb[0].mxu0 %v535
    %v1449 = vpop.f32.mrb[0].mxu0
    %v1450 = vadd.f32 %v680, %v1449
    %v1451 = vpop.f32.mrb[0].mxu0
    %v1452 = vadd.f32 %v684, %v1451
    %v1453 = vpop.f32.mrb[0].mxu0
    %v1454 = vadd.f32 %v680, %v1453
    %v1455 = vpop.f32.mrb[0].mxu0
    %v1456 = vadd.f32 %v684, %v1455
    %1457 = vdwg.mxu0
    %1458 = vmatprep.subr.bf16.mxu0 %v1140
    %1459 = vmatpush1.bf16.msra.mxu0 %v1139
    %1460 = vmatprep.subr.bf16.mxu0 %v1144
    %1461 = vmatpush1.bf16.msra.mxu0 %v1143
    %1462 = vmatprep.subr.bf16.mxu0 %v1148
    %1463 = vmatpush1.bf16.msra.mxu0 %v1147
    %1464 = vmatprep.subr.bf16.mxu0 %v1152
    %1465 = vmatpush1.bf16.msra.mxu0 %v1151
    %1466 = vmatprep.subr.bf16.mxu0 %v1156
    %1467 = vmatpush1.bf16.msra.mxu0 %v1155
    %1468 = vmatprep.subr.bf16.mxu0 %v1160
    %1469 = vmatpush1.bf16.msra.mxu0 %v1159
    %1470 = vmatprep.subr.bf16.mxu0 %v1164
    %1471 = vmatpush1.bf16.msra.mxu0 %v1163
    %1472 = vmatprep.subr.bf16.mxu0 %v1168
    %1473 = vmatpush1.bf16.msra.mxu0 %v1167
    %1474 = vmatprep.subr.bf16.mxu0 %v1172
    %1475 = vmatpush1.bf16.msra.mxu0 %v1171
    %1476 = vmatprep.subr.bf16.mxu0 %v1176
    %1477 = vmatpush1.bf16.msra.mxu0 %v1175
    %1478 = vmatprep.subr.bf16.mxu0 %v1180
    %1479 = vmatpush1.bf16.msra.mxu0 %v1179
    %1480 = vmatprep.subr.bf16.mxu0 %v1184
    %1481 = vmatpush1.bf16.msra.mxu0 %v1183
    %1482 = vmatprep.subr.bf16.mxu0 %v1188
    %1483 = vmatpush1.bf16.msra.mxu0 %v1187
    %1484 = vmatprep.subr.bf16.mxu0 %v1192
    %1485 = vmatpush1.bf16.msra.mxu0 %v1191
    %1486 = vmatprep.subr.bf16.mxu0 %v1196
    %1487 = vmatpush1.bf16.msra.mxu0 %v1195
    %1488 = vmatprep.subr.bf16.mxu0 %v1200
    %1489 = vmatpush1.bf16.msra.mxu0 %v1199
    %1490 = vmatprep.mubr.bf16.mxu0 %v538
    %1491 = vmatmul.mubr.bf16.gmra.mrb[0].mxu0 %v537
    %v1492 = vpop.f32.mrb[0].mxu0
    %v1493 = vadd.f32 %v1450, %v1492
    %v1494 = vpop.f32.mrb[0].mxu0
    %v1495 = vadd.f32 %v1452, %v1494
    %v1496 = vpop.f32.mrb[0].mxu0
    %v1497 = vadd.f32 %v1454, %v1496
    %v1498 = vpop.f32.mrb[0].mxu0
    %v1499 = vadd.f32 %v1456, %v1498
    %1500 = vdwg.mxu0
    %vm1501 = vcmp.gt.f32.partialorder %v1407, 0.0
    %vm1502 = vcmp.gt.f32.partialorder %v1409, 0.0
    %vm1503 = vcmp.gt.f32.partialorder %v1493, 0.0
    %vm1504 = vcmp.gt.f32.partialorder %v1495, 0.0
    %vm1505 = vcmp.gt.f32.partialorder %v1411, 0.0
    %vm1506 = vcmp.gt.f32.partialorder %v1413, 0.0
    %vm1507 = vcmp.gt.f32.partialorder %v1497, 0.0
    %vm1508 = vcmp.gt.f32.partialorder %v1499, 0.0
    %v1509 = vmul.f32 %v1407, 0.2
    %v1510 = vmul.f32 %v1409, 0.2
    %v1511 = vmul.f32 %v1493, 0.2
    %v1512 = vmul.f32 %v1495, 0.2
    %v1513 = vmul.f32 %v1411, 0.2
    %v1514 = vmul.f32 %v1413, 0.2
    %v1515 = vmul.f32 %v1497, 0.2
    %v1516 = vmul.f32 %v1499, 0.2
    %v1517 = vsel %vm1501, %v1407, %v1509
    %v1518 = vsel %vm1502, %v1409, %v1510
    %v1519 = vsel %vm1503, %v1493, %v1511
    %v1520 = vsel %vm1504, %v1495, %v1512
    %v1521 = vsel %vm1505, %v1411, %v1513
    %v1522 = vsel %vm1506, %v1413, %v1514
    %v1523 = vsel %vm1507, %v1497, %v1515
    %v1524 = vsel %vm1508, %v1499, %v1516
    %v1525 = vld [vmem:[%s7] sm:$0xf]
    %v1526 = vld [vmem:[%s8] sm:$0xf]
    %v1527 = vadd.f32 %v1517, %v1518
    %v1528 = vadd.f32 %v1527, %v1519
    %v1529 = vadd.f32 %v1528, %v1520
    %1530 = vadd.xlane.f32.xlu0 %v1529
    %v1531 = vpop.xlane.xlu0 %1530
    %v1532 = vadd.f32 %v1521, %v1522
    %v1533 = vadd.f32 %v1532, %v1523
    %v1534 = vadd.f32 %v1533, %v1524
    %1535 = vadd.xlane.f32.xlu0 %v1534
    %v1536 = vpop.xlane.xlu0 %1535
    %v1537 = vmul.f32 %v1531, %v434
    %v1538 = vmul.f32 %v1536, %v434
    %v1539 = vsub.f32 %v1517, %v1537
    %v1540 = vsub.f32 %v1518, %v1537
    %v1541 = vsub.f32 %v1519, %v1537
    %v1542 = vsub.f32 %v1520, %v1537
    %v1543 = vsub.f32 %v1521, %v1538
    %v1544 = vsub.f32 %v1522, %v1538
    %v1545 = vsub.f32 %v1523, %v1538
    %v1546 = vsub.f32 %v1524, %v1538
    %v1547 = vmul.f32 %v1539, %v1539
    %v1548 = vmul.f32 %v1540, %v1540
    %v1549 = vmul.f32 %v1541, %v1541
    %v1550 = vmul.f32 %v1542, %v1542
    %v1551 = vmul.f32 %v1543, %v1543
    %v1552 = vmul.f32 %v1544, %v1544
    %v1553 = vmul.f32 %v1545, %v1545
    %v1554 = vmul.f32 %v1546, %v1546
    %v1555 = vadd.f32 %v1547, %v1548
    %v1556 = vadd.f32 %v1555, %v1549
    %v1557 = vadd.f32 %v1556, %v1550
    %1558 = vadd.xlane.f32.xlu0 %v1557
    %v1559 = vpop.xlane.xlu0 %1558
    %v1560 = vadd.f32 %v1551, %v1552
    %v1561 = vadd.f32 %v1560, %v1553
    %v1562 = vadd.f32 %v1561, %v1554
    %1563 = vadd.xlane.f32.xlu0 %v1562
    %v1564 = vpop.xlane.xlu0 %1563
    %v1565 = vmul.f32 %v1559, %v434
    %v1566 = vmul.f32 %v1564, %v434
    %v1567 = vadd.f32 %v1565, 1e-05
    %v1568 = vadd.f32 %v1566, 1e-05
    %v1569 = vrsqrt.pop %v1567
    %v1570 = vrsqrt.pop %v1568
    %v1571 = vmul.f32 %v1539, %v1569
    %v1572 = vmul.f32 %v1540, %v1569
    %v1573 = vmul.f32 %v1541, %v1569
    %v1574 = vmul.f32 %v1542, %v1569
    %v1575 = vmul.f32 %v1543, %v1570
    %v1576 = vmul.f32 %v1544, %v1570
    %v1577 = vmul.f32 %v1545, %v1570
    %v1578 = vmul.f32 %v1546, %v1570
    %v1580 = vlaneseq
    %v1581 = vshrl.u32 %v1580, 7
    %v1582 = vsub.s32 0, %v1581
    %v1583 = vrot.slane %v1525, %v1582
    %v1584 = vlaneseq
    %v1585 = vshrl.u32 %v1584, 7
    %v1586 = vsub.s32 1, %v1585
    %v1587 = vrot.slane %v1525, %v1586
    %v1588 = vlaneseq
    %v1589 = vshrl.u32 %v1588, 7
    %v1590 = vsub.s32 2, %v1589
    %v1591 = vrot.slane %v1525, %v1590
    %v1592 = vlaneseq
    %v1593 = vshrl.u32 %v1592, 7
    %v1594 = vsub.s32 3, %v1593
    %v1595 = vrot.slane %v1525, %v1594
    %v1600 = vmul.f32 %v1571, %v1583
    %v1601 = vmul.f32 %v1572, %v1587
    %v1602 = vmul.f32 %v1573, %v1591
    %v1603 = vmul.f32 %v1574, %v1595
    %v1604 = vmul.f32 %v1575, %v1583
    %v1605 = vmul.f32 %v1576, %v1587
    %v1606 = vmul.f32 %v1577, %v1591
    %v1607 = vmul.f32 %v1578, %v1595
    %v1609 = vlaneseq
    %v1610 = vshrl.u32 %v1609, 7
    %v1611 = vsub.s32 0, %v1610
    %v1612 = vrot.slane %v1526, %v1611
    %v1613 = vlaneseq
    %v1614 = vshrl.u32 %v1613, 7
    %v1615 = vsub.s32 1, %v1614
    %v1616 = vrot.slane %v1526, %v1615
    %v1617 = vlaneseq
    %v1618 = vshrl.u32 %v1617, 7
    %v1619 = vsub.s32 2, %v1618
    %v1620 = vrot.slane %v1526, %v1619
    %v1621 = vlaneseq
    %v1622 = vshrl.u32 %v1621, 7
    %v1623 = vsub.s32 3, %v1622
    %v1624 = vrot.slane %v1526, %v1623
    %v1629 = vadd.f32 %v1600, %v1612
    %v1630 = vadd.f32 %v1601, %v1616
    %v1631 = vadd.f32 %v1602, %v1620
    %v1632 = vadd.f32 %v1603, %v1624
    %v1633 = vadd.f32 %v1604, %v1612
    %v1634 = vadd.f32 %v1605, %v1616
    %v1635 = vadd.f32 %v1606, %v1620
    %v1636 = vadd.f32 %v1607, %v1624
    %v1637 = vpack.c.bf16 %v1633, %v1629
    %v1638 = vpack.c.bf16 %v1634, %v1630
    %v1639 = vpack.c.bf16 %v1635, %v1631
    %v1640 = vpack.c.bf16 %v1636, %v1632
    %v1641 = vld [vmem:[#allocation8] sm:$0xf]
    %v1642 = vld [vmem:[#allocation8 + $0x4] sm:$0xf]
    %v1643 = vld [vmem:[#allocation8 + $0x8] sm:$0xf]
    %v1644 = vld [vmem:[#allocation8 + $0xc] sm:$0xf]
    %v1645 = vld [vmem:[#allocation8 + $0x10] sm:$0xf]
    %v1646 = vld [vmem:[#allocation8 + $0x14] sm:$0xf]
    %v1647 = vld [vmem:[#allocation8 + $0x18] sm:$0xf]
    %v1648 = vld [vmem:[#allocation8 + $0x1c] sm:$0xf]
    %v1649 = vld [vmem:[#allocation8 + $0x20] sm:$0xf]
    %v1650 = vld [vmem:[#allocation8 + $0x24] sm:$0xf]
    %v1651 = vld [vmem:[#allocation8 + $0x28] sm:$0xf]
    %v1652 = vld [vmem:[#allocation8 + $0x2c] sm:$0xf]
    %v1653 = vld [vmem:[#allocation8 + $0x30] sm:$0xf]
    %v1654 = vld [vmem:[#allocation8 + $0x34] sm:$0xf]
    %v1655 = vld [vmem:[#allocation8 + $0x38] sm:$0xf]
    %v1656 = vld [vmem:[#allocation8 + $0x3c] sm:$0xf]
    %v1657 = vld [vmem:[#allocation8 + $0x40] sm:$0xf]
    %v1658 = vld [vmem:[#allocation8 + $0x44] sm:$0xf]
    %v1659 = vld [vmem:[#allocation8 + $0x48] sm:$0xf]
    %v1660 = vld [vmem:[#allocation8 + $0x4c] sm:$0xf]
    %v1661 = vld [vmem:[#allocation8 + $0x50] sm:$0xf]
    %v1662 = vld [vmem:[#allocation8 + $0x54] sm:$0xf]
    %v1663 = vld [vmem:[#allocation8 + $0x58] sm:$0xf]
    %v1664 = vld [vmem:[#allocation8 + $0x5c] sm:$0xf]
    %v1665 = vld [vmem:[#allocation8 + $0x60] sm:$0xf]
    %v1666 = vld [vmem:[#allocation8 + $0x64] sm:$0xf]
    %v1667 = vld [vmem:[#allocation8 + $0x68] sm:$0xf]
    %v1668 = vld [vmem:[#allocation8 + $0x6c] sm:$0xf]
    %v1669 = vld [vmem:[#allocation8 + $0x70] sm:$0xf]
    %v1670 = vld [vmem:[#allocation8 + $0x74] sm:$0xf]
    %v1671 = vld [vmem:[#allocation8 + $0x78] sm:$0xf]
    %v1672 = vld [vmem:[#allocation8 + $0x7c] sm:$0xf]
    %v1673 = vld [vmem:[#allocation8 + $0x80] sm:$0xf]
    %v1674 = vld [vmem:[#allocation8 + $0x84] sm:$0xf]
    %v1675 = vld [vmem:[#allocation8 + $0x88] sm:$0xf]
    %v1676 = vld [vmem:[#allocation8 + $0x8c] sm:$0xf]
    %v1677 = vld [vmem:[#allocation8 + $0x90] sm:$0xf]
    %v1678 = vld [vmem:[#allocation8 + $0x94] sm:$0xf]
    %v1679 = vld [vmem:[#allocation8 + $0x98] sm:$0xf]
    %v1680 = vld [vmem:[#allocation8 + $0x9c] sm:$0xf]
    %v1681 = vld [vmem:[#allocation8 + $0xa0] sm:$0xf]
    %v1682 = vld [vmem:[#allocation8 + $0xa4] sm:$0xf]
    %v1683 = vld [vmem:[#allocation8 + $0xa8] sm:$0xf]
    %v1684 = vld [vmem:[#allocation8 + $0xac] sm:$0xf]
    %v1685 = vld [vmem:[#allocation8 + $0xb0] sm:$0xf]
    %v1686 = vld [vmem:[#allocation8 + $0xb4] sm:$0xf]
    %v1687 = vld [vmem:[#allocation8 + $0xb8] sm:$0xf]
    %v1688 = vld [vmem:[#allocation8 + $0xbc] sm:$0xf]
    %v1689 = vld [vmem:[#allocation8 + $0xc0] sm:$0xf]
    %v1690 = vld [vmem:[#allocation8 + $0xc4] sm:$0xf]
    %v1691 = vld [vmem:[#allocation8 + $0xc8] sm:$0xf]
    %v1692 = vld [vmem:[#allocation8 + $0xcc] sm:$0xf]
    %v1693 = vld [vmem:[#allocation8 + $0xd0] sm:$0xf]
    %v1694 = vld [vmem:[#allocation8 + $0xd4] sm:$0xf]
    %v1695 = vld [vmem:[#allocation8 + $0xd8] sm:$0xf]
    %v1696 = vld [vmem:[#allocation8 + $0xdc] sm:$0xf]
    %v1697 = vld [vmem:[#allocation8 + $0xe0] sm:$0xf]
    %v1698 = vld [vmem:[#allocation8 + $0xe4] sm:$0xf]
    %v1699 = vld [vmem:[#allocation8 + $0xe8] sm:$0xf]
    %v1700 = vld [vmem:[#allocation8 + $0xec] sm:$0xf]
    %v1701 = vld [vmem:[#allocation8 + $0xf0] sm:$0xf]
    %v1702 = vld [vmem:[#allocation8 + $0xf4] sm:$0xf]
    %v1703 = vld [vmem:[#allocation8 + $0xf8] sm:$0xf]
    %v1704 = vld [vmem:[#allocation8 + $0xfc] sm:$0xf]
    %v1705 = vld [vmem:[%s10] sm:$0x1]
    %v1707 = vlaneseq
    %v1708 = vshrl.u32 %v1707, 7
    %v1709 = vsub.s32 0, %v1708
    %v1710 = vrot.slane %v1705, %v1709
    %v1776 = vunpack.c.l.b16 %v1641
    %v1777 = vunpack.c.l.b16 %v1642
    %v1778 = vunpack.c.l.b16 %v1643
    %v1779 = vunpack.c.l.b16 %v1644
    %v1780 = vunpack.c.l.b16 %v1645
    %v1781 = vunpack.c.l.b16 %v1646
    %v1782 = vunpack.c.l.b16 %v1647
    %v1783 = vunpack.c.l.b16 %v1648
    %v1784 = vunpack.c.l.b16 %v1649
    %v1785 = vunpack.c.l.b16 %v1650
    %v1786 = vunpack.c.l.b16 %v1651
    %v1787 = vunpack.c.l.b16 %v1652
    %v1788 = vunpack.c.l.b16 %v1653
    %v1789 = vunpack.c.l.b16 %v1654
    %v1790 = vunpack.c.l.b16 %v1655
    %v1791 = vunpack.c.l.b16 %v1656
    %v1792 = vunpack.c.l.b16 %v1657
    %v1793 = vunpack.c.l.b16 %v1658
    %v1794 = vunpack.c.l.b16 %v1659
    %v1795 = vunpack.c.l.b16 %v1660
    %v1796 = vunpack.c.l.b16 %v1661
    %v1797 = vunpack.c.l.b16 %v1662
    %v1798 = vunpack.c.l.b16 %v1663
    %v1799 = vunpack.c.l.b16 %v1664
    %v1800 = vunpack.c.l.b16 %v1665
    %v1801 = vunpack.c.l.b16 %v1666
    %v1802 = vunpack.c.l.b16 %v1667
    %v1803 = vunpack.c.l.b16 %v1668
    %v1804 = vunpack.c.l.b16 %v1669
    %v1805 = vunpack.c.l.b16 %v1670
    %v1806 = vunpack.c.l.b16 %v1671
    %v1807 = vunpack.c.l.b16 %v1672
    %v1808 = vunpack.c.l.b16 %v1673
    %v1809 = vunpack.c.l.b16 %v1674
    %v1810 = vunpack.c.l.b16 %v1675
    %v1811 = vunpack.c.l.b16 %v1676
    %v1812 = vunpack.c.l.b16 %v1677
    %v1813 = vunpack.c.l.b16 %v1678
    %v1814 = vunpack.c.l.b16 %v1679
    %v1815 = vunpack.c.l.b16 %v1680
    %v1816 = vunpack.c.l.b16 %v1681
    %v1817 = vunpack.c.l.b16 %v1682
    %v1818 = vunpack.c.l.b16 %v1683
    %v1819 = vunpack.c.l.b16 %v1684
    %v1820 = vunpack.c.l.b16 %v1685
    %v1821 = vunpack.c.l.b16 %v1686
    %v1822 = vunpack.c.l.b16 %v1687
    %v1823 = vunpack.c.l.b16 %v1688
    %v1824 = vunpack.c.l.b16 %v1689
    %v1825 = vunpack.c.l.b16 %v1690
    %v1826 = vunpack.c.l.b16 %v1691
    %v1827 = vunpack.c.l.b16 %v1692
    %v1828 = vunpack.c.l.b16 %v1693
    %v1829 = vunpack.c.l.b16 %v1694
    %v1830 = vunpack.c.l.b16 %v1695
    %v1831 = vunpack.c.l.b16 %v1696
    %v1832 = vunpack.c.l.b16 %v1697
    %v1833 = vunpack.c.l.b16 %v1698
    %v1834 = vunpack.c.l.b16 %v1699
    %v1835 = vunpack.c.l.b16 %v1700
    %v1836 = vunpack.c.l.b16 %v1701
    %v1837 = vunpack.c.l.b16 %v1702
    %v1838 = vunpack.c.l.b16 %v1703
    %v1839 = vunpack.c.l.b16 %v1704
    %v1840 = vpack.c.b16 %v1777, %v1776
    %v1841 = vpack.c.b16 %v1779, %v1778
    %v1842 = vpack.c.b16 %v1781, %v1780
    %v1843 = vpack.c.b16 %v1783, %v1782
    %v1844 = vpack.c.b16 %v1785, %v1784
    %v1845 = vpack.c.b16 %v1787, %v1786
    %v1846 = vpack.c.b16 %v1789, %v1788
    %v1847 = vpack.c.b16 %v1791, %v1790
    %v1848 = vpack.c.b16 %v1793, %v1792
    %v1849 = vpack.c.b16 %v1795, %v1794
    %v1850 = vpack.c.b16 %v1797, %v1796
    %v1851 = vpack.c.b16 %v1799, %v1798
    %v1852 = vpack.c.b16 %v1801, %v1800
    %v1853 = vpack.c.b16 %v1803, %v1802
    %v1854 = vpack.c.b16 %v1805, %v1804
    %v1855 = vpack.c.b16 %v1807, %v1806
    %v1856 = vpack.c.b16 %v1809, %v1808
    %v1857 = vpack.c.b16 %v1811, %v1810
    %v1858 = vpack.c.b16 %v1813, %v1812
    %v1859 = vpack.c.b16 %v1815, %v1814
    %v1860 = vpack.c.b16 %v1817, %v1816
    %v1861 = vpack.c.b16 %v1819, %v1818
    %v1862 = vpack.c.b16 %v1821, %v1820
    %v1863 = vpack.c.b16 %v1823, %v1822
    %v1864 = vpack.c.b16 %v1825, %v1824
    %v1865 = vpack.c.b16 %v1827, %v1826
    %v1866 = vpack.c.b16 %v1829, %v1828
    %v1867 = vpack.c.b16 %v1831, %v1830
    %v1868 = vpack.c.b16 %v1833, %v1832
    %v1869 = vpack.c.b16 %v1835, %v1834
    %v1870 = vpack.c.b16 %v1837, %v1836
    %v1871 = vpack.c.b16 %v1839, %v1838
    %1904 = vmatprep.subr.bf16.mxu0 0
    %1905 = vmatpush1.bf16.msra.mxu0 %v1840
    %1906 = vmatprep.subr.bf16.mxu0 0
    %1907 = vmatpush1.bf16.msra.mxu0 %v1841
    %1908 = vmatprep.subr.bf16.mxu0 0
    %1909 = vmatpush1.bf16.msra.mxu0 %v1842
    %1910 = vmatprep.subr.bf16.mxu0 0
    %1911 = vmatpush1.bf16.msra.mxu0 %v1843
    %1912 = vmatprep.subr.bf16.mxu0 0
    %1913 = vmatpush1.bf16.msra.mxu0 %v1844
    %1914 = vmatprep.subr.bf16.mxu0 0
    %1915 = vmatpush1.bf16.msra.mxu0 %v1845
    %1916 = vmatprep.subr.bf16.mxu0 0
    %1917 = vmatpush1.bf16.msra.mxu0 %v1846
    %1918 = vmatprep.subr.bf16.mxu0 0
    %1919 = vmatpush1.bf16.msra.mxu0 %v1847
    %1920 = vmatprep.subr.bf16.mxu0 0
    %1921 = vmatpush1.bf16.msra.mxu0 %v1848
    %1922 = vmatprep.subr.bf16.mxu0 0
    %1923 = vmatpush1.bf16.msra.mxu0 %v1849
    %1924 = vmatprep.subr.bf16.mxu0 0
    %1925 = vmatpush1.bf16.msra.mxu0 %v1850
    %1926 = vmatprep.subr.bf16.mxu0 0
    %1927 = vmatpush1.bf16.msra.mxu0 %v1851
    %1928 = vmatprep.subr.bf16.mxu0 0
    %1929 = vmatpush1.bf16.msra.mxu0 %v1852
    %1930 = vmatprep.subr.bf16.mxu0 0
    %1931 = vmatpush1.bf16.msra.mxu0 %v1853
    %1932 = vmatprep.subr.bf16.mxu0 0
    %1933 = vmatpush1.bf16.msra.mxu0 %v1854
    %1934 = vmatprep.subr.bf16.mxu0 0
    %1935 = vmatpush1.bf16.msra.mxu0 %v1855
    %1936 = vmatprep.mubr.bf16.mxu0 %v1638
    %1937 = vmatmul.mubr.bf16.gmra.mrb[0].mxu0 %v1637
    %v1938 = vpop.f32.mrb[0].mxu0
    %v1939 = vadd.f32 %v1710, %v1938
    %v1940 = vpop.f32.mrb[0].mxu0
    %v1941 = vpop.f32.mrb[0].mxu0
    %v1942 = vadd.f32 %v1710, %v1941
    %v1943 = vpop.f32.mrb[0].mxu0
    %1944 = vdwg.mxu0
    %1945 = vmatprep.subr.bf16.mxu0 0
    %1946 = vmatpush1.bf16.msra.mxu0 %v1856
    %1947 = vmatprep.subr.bf16.mxu0 0
    %1948 = vmatpush1.bf16.msra.mxu0 %v1857
    %1949 = vmatprep.subr.bf16.mxu0 0
    %1950 = vmatpush1.bf16.msra.mxu0 %v1858
    %1951 = vmatprep.subr.bf16.mxu0 0
    %1952 = vmatpush1.bf16.msra.mxu0 %v1859
    %1953 = vmatprep.subr.bf16.mxu0 0
    %1954 = vmatpush1.bf16.msra.mxu0 %v1860
    %1955 = vmatprep.subr.bf16.mxu0 0
    %1956 = vmatpush1.bf16.msra.mxu0 %v1861
    %1957 = vmatprep.subr.bf16.mxu0 0
    %1958 = vmatpush1.bf16.msra.mxu0 %v1862
    %1959 = vmatprep.subr.bf16.mxu0 0
    %1960 = vmatpush1.bf16.msra.mxu0 %v1863
    %1961 = vmatprep.subr.bf16.mxu0 0
    %1962 = vmatpush1.bf16.msra.mxu0 %v1864
    %1963 = vmatprep.subr.bf16.mxu0 0
    %1964 = vmatpush1.bf16.msra.mxu0 %v1865
    %1965 = vmatprep.subr.bf16.mxu0 0
    %1966 = vmatpush1.bf16.msra.mxu0 %v1866
    %1967 = vmatprep.subr.bf16.mxu0 0
    %1968 = vmatpush1.bf16.msra.mxu0 %v1867
    %1969 = vmatprep.subr.bf16.mxu0 0
    %1970 = vmatpush1.bf16.msra.mxu0 %v1868
    %1971 = vmatprep.subr.bf16.mxu0 0
    %1972 = vmatpush1.bf16.msra.mxu0 %v1869
    %1973 = vmatprep.subr.bf16.mxu0 0
    %1974 = vmatpush1.bf16.msra.mxu0 %v1870
    %1975 = vmatprep.subr.bf16.mxu0 0
    %1976 = vmatpush1.bf16.msra.mxu0 %v1871
    %1977 = vmatprep.mubr.bf16.mxu0 %v1640
    %1978 = vmatmul.mubr.bf16.gmra.mrb[0].mxu0 %v1639
    %v1979 = vpop.f32.mrb[0].mxu0
    %v1980 = vadd.f32 %v1939, %v1979
    %v1981 = vpop.f32.mrb[0].mxu0
    %v1982 = vpop.f32.mrb[0].mxu0
    %v1983 = vadd.f32 %v1942, %v1982
    %v1984 = vpop.f32.mrb[0].mxu0
    %1985 = vdwg.mxu0
    %v1986 = vtanh.pop %v1980
    %v1987 = vtanh.pop %v1983
    %v1988 = vmul.f32 %v1986, 0.1
    %v1989 = vmul.f32 %v1987, 0.1
    %1990 = vst [vmem:[#allocation10] sm:$0xff] %v1988
    %1991 = vst [vmem:[#allocation10 + $0x8] sm:$0xff] %v1989
    // Predicated region
    $region62: #{tpu_custom_call.1} parent=1 // pred_check
      _
    $region63: #{tpu_custom_call.1} parent=1 // pred_check_branch
      %1993 = sbr.rel (0) target = $region65
    $region64: #{tpu_custom_call.1} parent=1 // pred_region
      %s1995 = ssub.s32 256, 256
      %1996 = vsyncadd [#allocation4], %s1995
      %s1997 = sshll.u32 [#allocation10], 4
      %s1998 = int_to_ptr.vmem [resolvable:$true] %s1997
      %2003 = dma.vmem_to_hbm [thread:$0]  %s1998, 256, %s11, [#allocation4], 128, 128, 8
    $region65: #{tpu_custom_call.1} parent=1 // pred_fallthru
      _
    // Predicated region
    $region66: #{tpu_custom_call.1} parent=1 // pred_check
      _
    $region67: #{tpu_custom_call.1} parent=1 // pred_check_branch
      %2005 = sbr.rel (0) target = $region69
    $region68: #{tpu_custom_call.1} parent=1 // pred_region
      %2006 = dma.done [#allocation4], 256
    $region69: #{tpu_custom_call.1} parent=1 // pred_fallthru
      _
    %2007 = vsyncpa [#allocation3], 1
    %2008 = vsyncpa [#allocation6], 1
    %2009 = vsyncpa [#allocation9], 1
    %2010 = vsyncpa [#allocation4], 1

</llo_original>
